<compile_context>
chip_gen: v7x
topology: tpu7x:2x2x1
jax: 0.10.0
libtpu: 0.0.40
codegen_flags: <defaults>
</compile_context>

<pallas_src>
import functools

import jax
import jax.numpy as jnp
from jax.experimental import pallas as pl
from jax.experimental.pallas import tpu as pltpu

NEG_SLOPE = 0.01          # PyTorch nn.LeakyReLU default negative_slope
ENC_DIM = 9 * 64          # outputEncDim
LANE = 128                # TPU lane width


def _leaky(x):
    return jnp.where(x > 0, x, NEG_SLOPE * x)


def _relu(x):
    return jnp.maximum(x, 0.0)


def _round_up(n, m):
    return ((n + m - 1) // m) * m


# ------------------------------ kernel ------------------------------

def actor_kernel(
    obs_ref,
    # fused block-diagonal prop encoders
    w1_ref, b1_ref, w2_ref, b2_ref,
    # teammate encoder (teammates == 1)
    tw1_ref, tb1_ref, tw2_ref, tb2_ref,
    # rival encoder (rivals == 1)
    rw1_ref, rb1_ref, rw2_ref, rb2_ref,
    # pi head (lane-padded): Linear/ReLU x2 + Linear/Tanh
    piw1_ref, pib1_ref, piw2_ref, pib2_ref, piw3_ref, pib3_ref,
    act_limit_ref,
    out_ref,
    *, teammates, rivals,
):
    obs = obs_ref[...]                                                   # [bt, obs_dim]

    # --- 9 prop encoders fused as block-diag matmuls: obs[:, :18] -> [bt, 576]
    x = obs[:, :18]
    h = _leaky(jnp.dot(x, w1_ref[...], preferred_element_type=jnp.float32) + b1_ref[...])
    enc = _leaky(jnp.dot(h, w2_ref[...], preferred_element_type=jnp.float32) + b2_ref[...])

    # --- teammate encoder consumes a slice of the ENCODED tensor (PyTorch quirk)
    if teammates:
        t_in = enc[:, 18:18 + 12]                                        # [bt, 12]
        th = _leaky(jnp.dot(t_in, tw1_ref[...], preferred_element_type=jnp.float32) + tb1_ref[...])
        th = _leaky(jnp.dot(th, tw2_ref[...], preferred_element_type=jnp.float32) + tb2_ref[...])
        enc = enc + th                                                   # [bt, 576]

    rival_offset = 18 + 12 * teammates
    if rivals:
        r_in = enc[:, rival_offset:rival_offset + 9]                     # [bt, 9]
        rh = _leaky(jnp.dot(r_in, rw1_ref[...], preferred_element_type=jnp.float32) + rb1_ref[...])
        rh = _leaky(jnp.dot(rh, rw2_ref[...], preferred_element_type=jnp.float32) + rb2_ref[...])
        enc = enc + rh                                                   # [bt, 576]

    # --- pi head: 576 -> h1p -> h2p -> act_pad (padded dims carry exact zeros)
    h = _relu(jnp.dot(enc, piw1_ref[...], preferred_element_type=jnp.float32) + pib1_ref[...])
    h = _relu(jnp.dot(h, piw2_ref[...], preferred_element_type=jnp.float32) + pib2_ref[...])
    a = jnp.tanh(jnp.dot(h, piw3_ref[...], preferred_element_type=jnp.float32) + pib3_ref[...])

    out_ref[...] = act_limit_ref[...] * a                                # [bt, act_pad]


# ------------------------------ packing ------------------------------

def _block_diag(blocks):
    rows = sum(b.shape[0] for b in blocks)
    cols = sum(b.shape[1] for b in blocks)
    out = jnp.zeros((rows, cols), blocks[0].dtype)
    r = c = 0
    for b in blocks:
        out = out.at[r:r + b.shape[0], c:c + b.shape[1]].set(b)
        r += b.shape[0]
        c += b.shape[1]
    return out


def _pad2(a, rows, cols):
    return jnp.pad(a, ((0, rows - a.shape[0]), (0, cols - a.shape[1])))


def pack_params(params, *, weight_dtype=jnp.float32):
    """Packs raw per-layer params into kernel-friendly (block-diag, lane-padded) form.

    weight_dtype=jnp.bfloat16 is recommended on v6e/v7x (halves weight DMA and
    vreg footprint; dots still accumulate in f32).  f32 keeps bit-tight accuracy.
    """
    (pw1, pb1, pw2, pb2, tw1, tb1, tw2, tb2,
     rw1, rb1, rw2, rb2, piw1, pib1, piw2, pib2, piw3, pib3, act_limit) = params

    # block-diagonal fusion of the 9 prop encoders
    W1 = _block_diag([pw1[i] for i in range(9)])                 # [18, 288]
    B1 = jnp.concatenate([pb1[i] for i in range(9)], axis=-1)    # [1, 288]
    W2 = _block_diag([pw2[i] for i in range(9)])                 # [288, 576]
    B2 = jnp.concatenate([pb2[i] for i in range(9)], axis=-1)    # [1, 576]

    h1 = piw1.shape[1]
    h2 = piw2.shape[1]
    act_dim = piw3.shape[1]
    h1p = _round_up(h1, LANE)
    h2p = _round_up(h2, LANE)
    act_pad = _round_up(act_dim, LANE)

    # lane-pad the pi head; padded cols of each hidden layer are exactly 0
    # (zero weights + zero bias + ReLU), so padded rows of the next weight
    # (also zero) contribute nothing -> numerics identical to the unpadded net.
    piw1p = _pad2(piw1, ENC_DIM, h1p); pib1p = _pad2(pib1, 1, h1p)
    piw2p = _pad2(piw2, h1p, h2p);     pib2p = _pad2(pib2, 1, h2p)
    piw3p = _pad2(piw3, h2p, act_pad); pib3p = _pad2(pib3, 1, act_pad)
    act_limit_p = _pad2(act_limit, 1, act_pad)

    packed = [W1, B1, W2, B2,
              tw1, tb1, tw2, tb2,
              rw1, rb1, rw2, rb2,
              piw1p, pib1p, piw2p, pib2p, piw3p, pib3p]
    packed = [p.astype(weight_dtype) for p in packed]
    packed.append(act_limit_p.astype(jnp.float32))
    return packed, act_dim


# ------------------------------ wrapper ------------------------------

def mlp_actor_forward(obs, packed_params, act_dim, *, teammates, rivals, batch_tile=None):
    """Full MLPActor forward as one Pallas kernel with a 1-D parallel batch grid."""
    b, obs_dim = obs.shape
    if batch_tile is None:
        # Big enough to fill vregs / amortize per-step overhead, small enough
        # to keep intermediates (enc is bt x 576 f32) tiny relative to VMEM
        # on every generation (v5e/v6e 128 MiB, v7x 64 MiB).
        batch_tile = 512 if b >= 512 else max(8, _round_up(b, 8))
    b_pad = _round_up(b, batch_tile)
    if b_pad != b:
        obs = jnp.pad(obs, ((0, b_pad - b), (0, 0)))
    grid = (b_pad // batch_tile,)
    act_pad = packed_params[-1].shape[-1]

    in_specs = [pl.BlockSpec((batch_tile, obs_dim), lambda i: (i, 0))]
    # weights: full-extent blocks, same block index every grid step -> VMEM resident
    in_specs += [pl.BlockSpec(p.shape, lambda i: (0, 0)) for p in packed_params]

    kernel = functools.partial(actor_kernel, teammates=teammates, rivals=rivals)
    out = pl.pallas_call(
        kernel,
        out_shape=jax.ShapeDtypeStruct((b_pad, act_pad), jnp.float32),
        grid=grid,
        in_specs=in_specs,
        out_specs=pl.BlockSpec((batch_tile, act_pad), lambda i: (i, 0)),
        compiler_params=pltpu.CompilerParams(
            dimension_semantics=("parallel",),   # shards batch tiles across TCs on v7x
        ),
    )(obs, *packed_params)
    return out[:b, :act_dim]


# ------------------- deterministic parameter setup -------------------

def _linear_params(key, fan_in, fan_out, normal_init=False):
    """Mimics nn.Linear default init (uniform +-1/sqrt(fan_in)); weight stored [in, out]."""
    kw, kb = jax.random.split(key)
    bound = 1.0 / jnp.sqrt(jnp.float32(fan_in))
    if normal_init:
        w = 1e-4 * jax.random.normal(kw, (fan_in, fan_out), jnp.float32)
    else:
        w = jax.random.uniform(kw, (fan_in, fan_out), jnp.float32, -bound, bound)
    b = jax.random.uniform(kb, (1, fan_out), jnp.float32, -bound, bound)
    return w, b


def make_params(key, hidden_sizes, act_dim, act_limit, teammates, rivals):
    keys = iter(jax.random.split(key, 64))

    # 9 prop encoders: 2 -> 32 -> 64, stacked on leading axis
    pw1, pb1, pw2, pb2 = [], [], [], []
    for _ in range(9):
        w1, b1 = _linear_params(next(keys), 2, 32)
        w2, b2 = _linear_params(next(keys), 32, 64)
        pw1.append(w1); pb1.append(b1); pw2.append(w2); pb2.append(b2)
    pw1 = jnp.stack(pw1); pb1 = jnp.stack(pb1)
    pw2 = jnp.stack(pw2); pb2 = jnp.stack(pb2)

    assert teammates in (0, 1) and rivals in (0, 1), \
        "original PyTorch `obs += cat(...)` only runs for 0 or 1 teammates/rivals"

    # teammate encoder: 12 -> 32 -> 576, weights ~ N(0, 1e-4)
    tw1, tb1 = _linear_params(next(keys), 12, 32, normal_init=True)
    tw2, tb2 = _linear_params(next(keys), 32, ENC_DIM, normal_init=True)

    # rival encoder: 9 -> 32 -> 576, weights ~ N(0, 1e-4)
    rw1, rb1 = _linear_params(next(keys), 9, 32, normal_init=True)
    rw2, rb2 = _linear_params(next(keys), 32, ENC_DIM, normal_init=True)

    # pi head: 576 -> hidden_sizes -> act_dim
    h1, h2 = hidden_sizes
    piw1, pib1 = _linear_params(next(keys), ENC_DIM, h1)
    piw2, pib2 = _linear_params(next(keys), h1, h2)
    piw3, pib3 = _linear_params(next(keys), h2, act_dim)

    act_limit = jnp.asarray(act_limit, jnp.float32).reshape(1, act_dim)

    return [pw1, pb1, pw2, pb2,
            tw1, tb1, tw2, tb2,
            rw1, rb1, rw2, rb2,
            piw1, pib1, piw2, pib2, piw3, pib3,
            act_limit]


# ---------------- pure-JAX reference (for verification) ----------------

def reference_forward(obs, params, *, teammates, rivals):
    (pw1, pb1, pw2, pb2, tw1, tb1, tw2, tb2,
     rw1, rb1, rw2, rb2, piw1, pib1, piw2, pib2, piw3, pib3, act_limit) = params

    parts = []
    for i in range(9):
        x = obs[:, 2 * i:2 * (i + 1)]
        h = _leaky(x @ pw1[i] + pb1[i])
        h = _leaky(h @ pw2[i] + pb2[i])
        parts.append(h)
    enc = jnp.concatenate(parts, axis=-1)
    if teammates:
        th = _leaky(_leaky(enc[:, 18:30] @ tw1 + tb1) @ tw2 + tb2)
        enc = enc + th
    off = 18 + 12 * teammates
    if rivals:
        rh = _leaky(_leaky(enc[:, off:off + 9] @ rw1 + rb1) @ rw2 + rb2)
        enc = enc + rh
    h = _relu(enc @ piw1 + pib1)
    h = _relu(h @ piw2 + pib2)
    return act_limit * jnp.tanh(h @ piw3 + pib3)


if __name__ == "__main__":
    TEAMMATES, RIVALS = 1, 1
    BATCH = 2
    OBS_DIM = 18 + 12 * TEAMMATES + 9 * RIVALS   # 39
    HIDDEN_SIZES = (64, 64)
    ACT_DIM = 3
    ACT_LIMIT = [1.0, 0.5, 2.0]

    key = jax.random.PRNGKey(0)
    k_obs, k_par = jax.random.split(key)
    obs = jax.random.normal(k_obs, (BATCH, OBS_DIM), jnp.float32)
    params = make_params(k_par, HIDDEN_SIZES, ACT_DIM, ACT_LIMIT, TEAMMATES, RIVALS)

    # f32 weights here to keep a strict allclose check; use weight_dtype=jnp.bfloat16
    # on v6e/v7x for max throughput (loosen the tolerance accordingly).
    packed, act_dim = pack_params(params, weight_dtype=jnp.float32)

    out = mlp_actor_forward(obs, packed, act_dim, teammates=TEAMMATES, rivals=RIVALS)
    out = jax.block_until_ready(out)

    ref = reference_forward(obs, params, teammates=TEAMMATES, rivals=RIVALS)
    assert out.shape == (BATCH, ACT_DIM)
    assert jnp.allclose(out, ref, atol=1e-5, rtol=1e-4), (out, ref)

    print("KERNEL_OK")
</pallas_src>

<mosaic_0001>
module attributes {stable_mosaic.version = 11 : i64} {
  func.func @actor_kernel(%arg0: i32, %arg1: memref<8x39xf32, #tpu.memory_space<vmem>>, %arg2: memref<18x288xf32, #tpu.memory_space<vmem>>, %arg3: memref<1x288xf32, #tpu.memory_space<vmem>>, %arg4: memref<288x576xf32, #tpu.memory_space<vmem>>, %arg5: memref<1x576xf32, #tpu.memory_space<vmem>>, %arg6: memref<12x32xf32, #tpu.memory_space<vmem>>, %arg7: memref<1x32xf32, #tpu.memory_space<vmem>>, %arg8: memref<32x576xf32, #tpu.memory_space<vmem>>, %arg9: memref<1x576xf32, #tpu.memory_space<vmem>>, %arg10: memref<9x32xf32, #tpu.memory_space<vmem>>, %arg11: memref<1x32xf32, #tpu.memory_space<vmem>>, %arg12: memref<32x576xf32, #tpu.memory_space<vmem>>, %arg13: memref<1x576xf32, #tpu.memory_space<vmem>>, %arg14: memref<576x128xf32, #tpu.memory_space<vmem>>, %arg15: memref<1x128xf32, #tpu.memory_space<vmem>>, %arg16: memref<128x128xf32, #tpu.memory_space<vmem>>, %arg17: memref<1x128xf32, #tpu.memory_space<vmem>>, %arg18: memref<128x128xf32, #tpu.memory_space<vmem>>, %arg19: memref<1x128xf32, #tpu.memory_space<vmem>>, %arg20: memref<1x128xf32, #tpu.memory_space<vmem>>, %arg21: memref<8x128xf32, #tpu.memory_space<vmem>>) attributes {dimension_semantics = [#tpu.dimension_semantics<parallel>], iteration_bounds = array<i64: 1>, scalar_prefetch = 0 : i64, scratch_operands = 0 : i64, tpu.core_type = #tpu.core_type<tc>, window_params = [{transform_indices = @transform_0, window_bounds = array<i64: 8, 39>}, {pipeline_mode = #tpu.pipeline_mode<synchronous>, transform_indices = @transform_1, window_bounds = array<i64: 18, 288>}, {pipeline_mode = #tpu.pipeline_mode<synchronous>, transform_indices = @transform_2, window_bounds = array<i64: 1, 288>}, {pipeline_mode = #tpu.pipeline_mode<synchronous>, transform_indices = @transform_3, window_bounds = array<i64: 288, 576>}, {pipeline_mode = #tpu.pipeline_mode<synchronous>, transform_indices = @transform_4, window_bounds = array<i64: 1, 576>}, {pipeline_mode = #tpu.pipeline_mode<synchronous>, transform_indices = @transform_5, window_bounds = array<i64: 12, 32>}, {pipeline_mode = #tpu.pipeline_mode<synchronous>, transform_indices = @transform_6, window_bounds = array<i64: 1, 32>}, {pipeline_mode = #tpu.pipeline_mode<synchronous>, transform_indices = @transform_7, window_bounds = array<i64: 32, 576>}, {pipeline_mode = #tpu.pipeline_mode<synchronous>, transform_indices = @transform_8, window_bounds = array<i64: 1, 576>}, {pipeline_mode = #tpu.pipeline_mode<synchronous>, transform_indices = @transform_9, window_bounds = array<i64: 9, 32>}, {pipeline_mode = #tpu.pipeline_mode<synchronous>, transform_indices = @transform_10, window_bounds = array<i64: 1, 32>}, {pipeline_mode = #tpu.pipeline_mode<synchronous>, transform_indices = @transform_11, window_bounds = array<i64: 32, 576>}, {pipeline_mode = #tpu.pipeline_mode<synchronous>, transform_indices = @transform_12, window_bounds = array<i64: 1, 576>}, {pipeline_mode = #tpu.pipeline_mode<synchronous>, transform_indices = @transform_13, window_bounds = array<i64: 576, 128>}, {pipeline_mode = #tpu.pipeline_mode<synchronous>, transform_indices = @transform_14, window_bounds = array<i64: 1, 128>}, {pipeline_mode = #tpu.pipeline_mode<synchronous>, transform_indices = @transform_15, window_bounds = array<i64: 128, 128>}, {pipeline_mode = #tpu.pipeline_mode<synchronous>, transform_indices = @transform_16, window_bounds = array<i64: 1, 128>}, {pipeline_mode = #tpu.pipeline_mode<synchronous>, transform_indices = @transform_17, window_bounds = array<i64: 128, 128>}, {pipeline_mode = #tpu.pipeline_mode<synchronous>, transform_indices = @transform_18, window_bounds = array<i64: 1, 128>}, {pipeline_mode = #tpu.pipeline_mode<synchronous>, transform_indices = @transform_19, window_bounds = array<i64: 1, 128>}, {transform_indices = @transform_20, window_bounds = array<i64: 8, 128>}]} {
    %c0 = arith.constant 0 : index
    %c0_0 = arith.constant 0 : index
    %0 = vector.load %arg1[%c0, %c0_0] : memref<8x39xf32, #tpu.memory_space<vmem>>, vector<8x39xf32>
    %1 = vector.extract_strided_slice %0 {offsets = [0, 0], sizes = [8, 18], strides = [1, 1]} : vector<8x39xf32> to vector<8x18xf32>
    %c0_1 = arith.constant 0 : index
    %c0_2 = arith.constant 0 : index
    %2 = vector.load %arg2[%c0_1, %c0_2] : memref<18x288xf32, #tpu.memory_space<vmem>>, vector<18x288xf32>
    %cst = arith.constant dense<0.000000e+00> : vector<8x288xf32>
    %3 = tpu.matmul %1, %2, %cst {dimension_numbers = #tpu.dot_dimension_numbers<[1], [0], [0], [1], [0, 0, 1, 1], [], []>} : vector<8x18xf32>, vector<18x288xf32>, vector<8x288xf32> -> vector<8x288xf32>
    %c0_3 = arith.constant 0 : index
    %c0_4 = arith.constant 0 : index
    %4 = vector.load %arg3[%c0_3, %c0_4] : memref<1x288xf32, #tpu.memory_space<vmem>>, vector<1x288xf32>
    %5 = vector.broadcast %4 : vector<1x288xf32> to vector<8x288xf32>
    %6 = arith.addf %3, %5 : vector<8x288xf32>
    %cst_5 = arith.constant 0.000000e+00 : f32
    %7 = vector.broadcast %cst_5 : f32 to vector<8x288xf32>
    %8 = arith.cmpf ogt, %6, %7 : vector<8x288xf32>
    %cst_6 = arith.constant 0.00999999977 : f32
    %9 = vector.broadcast %cst_6 : f32 to vector<8x288xf32>
    %10 = arith.mulf %9, %6 : vector<8x288xf32>
    %11 = arith.select %8, %6, %10 : vector<8x288xi1>, vector<8x288xf32>
    %c0_7 = arith.constant 0 : index
    %c0_8 = arith.constant 0 : index
    %12 = vector.load %arg4[%c0_7, %c0_8] : memref<288x576xf32, #tpu.memory_space<vmem>>, vector<288x576xf32>
    %cst_9 = arith.constant dense<0.000000e+00> : vector<8x576xf32>
    %13 = tpu.matmul %11, %12, %cst_9 {dimension_numbers = #tpu.dot_dimension_numbers<[1], [0], [0], [1], [0, 0, 1, 1], [], []>} : vector<8x288xf32>, vector<288x576xf32>, vector<8x576xf32> -> vector<8x576xf32>
    %c0_10 = arith.constant 0 : index
    %c0_11 = arith.constant 0 : index
    %14 = vector.load %arg5[%c0_10, %c0_11] : memref<1x576xf32, #tpu.memory_space<vmem>>, vector<1x576xf32>
    %15 = vector.broadcast %14 : vector<1x576xf32> to vector<8x576xf32>
    %16 = arith.addf %13, %15 : vector<8x576xf32>
    %cst_12 = arith.constant 0.000000e+00 : f32
    %17 = vector.broadcast %cst_12 : f32 to vector<8x576xf32>
    %18 = arith.cmpf ogt, %16, %17 : vector<8x576xf32>
    %cst_13 = arith.constant 0.00999999977 : f32
    %19 = vector.broadcast %cst_13 : f32 to vector<8x576xf32>
    %20 = arith.mulf %19, %16 : vector<8x576xf32>
    %21 = arith.select %18, %16, %20 : vector<8x576xi1>, vector<8x576xf32>
    %22 = vector.extract_strided_slice %21 {offsets = [0, 18], sizes = [8, 12], strides = [1, 1]} : vector<8x576xf32> to vector<8x12xf32>
    %c0_14 = arith.constant 0 : index
    %c0_15 = arith.constant 0 : index
    %23 = vector.load %arg6[%c0_14, %c0_15] : memref<12x32xf32, #tpu.memory_space<vmem>>, vector<12x32xf32>
    %cst_16 = arith.constant dense<0.000000e+00> : vector<8x32xf32>
    %24 = tpu.matmul %22, %23, %cst_16 {dimension_numbers = #tpu.dot_dimension_numbers<[1], [0], [0], [1], [0, 0, 1, 1], [], []>} : vector<8x12xf32>, vector<12x32xf32>, vector<8x32xf32> -> vector<8x32xf32>
    %c0_17 = arith.constant 0 : index
    %c0_18 = arith.constant 0 : index
    %25 = vector.load %arg7[%c0_17, %c0_18] : memref<1x32xf32, #tpu.memory_space<vmem>>, vector<1x32xf32>
    %26 = vector.broadcast %25 : vector<1x32xf32> to vector<8x32xf32>
    %27 = arith.addf %24, %26 : vector<8x32xf32>
    %cst_19 = arith.constant 0.000000e+00 : f32
    %28 = vector.broadcast %cst_19 : f32 to vector<8x32xf32>
    %29 = arith.cmpf ogt, %27, %28 : vector<8x32xf32>
    %cst_20 = arith.constant 0.00999999977 : f32
    %30 = vector.broadcast %cst_20 : f32 to vector<8x32xf32>
    %31 = arith.mulf %30, %27 : vector<8x32xf32>
    %32 = arith.select %29, %27, %31 : vector<8x32xi1>, vector<8x32xf32>
    %c0_21 = arith.constant 0 : index
    %c0_22 = arith.constant 0 : index
    %33 = vector.load %arg8[%c0_21, %c0_22] : memref<32x576xf32, #tpu.memory_space<vmem>>, vector<32x576xf32>
    %cst_23 = arith.constant dense<0.000000e+00> : vector<8x576xf32>
    %34 = tpu.matmul %32, %33, %cst_23 {dimension_numbers = #tpu.dot_dimension_numbers<[1], [0], [0], [1], [0, 0, 1, 1], [], []>} : vector<8x32xf32>, vector<32x576xf32>, vector<8x576xf32> -> vector<8x576xf32>
    %c0_24 = arith.constant 0 : index
    %c0_25 = arith.constant 0 : index
    %35 = vector.load %arg9[%c0_24, %c0_25] : memref<1x576xf32, #tpu.memory_space<vmem>>, vector<1x576xf32>
    %36 = vector.broadcast %35 : vector<1x576xf32> to vector<8x576xf32>
    %37 = arith.addf %34, %36 : vector<8x576xf32>
    %cst_26 = arith.constant 0.000000e+00 : f32
    %38 = vector.broadcast %cst_26 : f32 to vector<8x576xf32>
    %39 = arith.cmpf ogt, %37, %38 : vector<8x576xf32>
    %cst_27 = arith.constant 0.00999999977 : f32
    %40 = vector.broadcast %cst_27 : f32 to vector<8x576xf32>
    %41 = arith.mulf %40, %37 : vector<8x576xf32>
    %42 = arith.select %39, %37, %41 : vector<8x576xi1>, vector<8x576xf32>
    %43 = arith.addf %21, %42 : vector<8x576xf32>
    %44 = vector.extract_strided_slice %43 {offsets = [0, 30], sizes = [8, 9], strides = [1, 1]} : vector<8x576xf32> to vector<8x9xf32>
    %c0_28 = arith.constant 0 : index
    %c0_29 = arith.constant 0 : index
    %45 = vector.load %arg10[%c0_28, %c0_29] : memref<9x32xf32, #tpu.memory_space<vmem>>, vector<9x32xf32>
    %cst_30 = arith.constant dense<0.000000e+00> : vector<8x32xf32>
    %46 = tpu.matmul %44, %45, %cst_30 {dimension_numbers = #tpu.dot_dimension_numbers<[1], [0], [0], [1], [0, 0, 1, 1], [], []>} : vector<8x9xf32>, vector<9x32xf32>, vector<8x32xf32> -> vector<8x32xf32>
    %c0_31 = arith.constant 0 : index
    %c0_32 = arith.constant 0 : index
    %47 = vector.load %arg11[%c0_31, %c0_32] : memref<1x32xf32, #tpu.memory_space<vmem>>, vector<1x32xf32>
    %48 = vector.broadcast %47 : vector<1x32xf32> to vector<8x32xf32>
    %49 = arith.addf %46, %48 : vector<8x32xf32>
    %cst_33 = arith.constant 0.000000e+00 : f32
    %50 = vector.broadcast %cst_33 : f32 to vector<8x32xf32>
    %51 = arith.cmpf ogt, %49, %50 : vector<8x32xf32>
    %cst_34 = arith.constant 0.00999999977 : f32
    %52 = vector.broadcast %cst_34 : f32 to vector<8x32xf32>
    %53 = arith.mulf %52, %49 : vector<8x32xf32>
    %54 = arith.select %51, %49, %53 : vector<8x32xi1>, vector<8x32xf32>
    %c0_35 = arith.constant 0 : index
    %c0_36 = arith.constant 0 : index
    %55 = vector.load %arg12[%c0_35, %c0_36] : memref<32x576xf32, #tpu.memory_space<vmem>>, vector<32x576xf32>
    %cst_37 = arith.constant dense<0.000000e+00> : vector<8x576xf32>
    %56 = tpu.matmul %54, %55, %cst_37 {dimension_numbers = #tpu.dot_dimension_numbers<[1], [0], [0], [1], [0, 0, 1, 1], [], []>} : vector<8x32xf32>, vector<32x576xf32>, vector<8x576xf32> -> vector<8x576xf32>
    %c0_38 = arith.constant 0 : index
    %c0_39 = arith.constant 0 : index
    %57 = vector.load %arg13[%c0_38, %c0_39] : memref<1x576xf32, #tpu.memory_space<vmem>>, vector<1x576xf32>
    %58 = vector.broadcast %57 : vector<1x576xf32> to vector<8x576xf32>
    %59 = arith.addf %56, %58 : vector<8x576xf32>
    %cst_40 = arith.constant 0.000000e+00 : f32
    %60 = vector.broadcast %cst_40 : f32 to vector<8x576xf32>
    %61 = arith.cmpf ogt, %59, %60 : vector<8x576xf32>
    %cst_41 = arith.constant 0.00999999977 : f32
    %62 = vector.broadcast %cst_41 : f32 to vector<8x576xf32>
    %63 = arith.mulf %62, %59 : vector<8x576xf32>
    %64 = arith.select %61, %59, %63 : vector<8x576xi1>, vector<8x576xf32>
    %65 = arith.addf %43, %64 : vector<8x576xf32>
    %c0_42 = arith.constant 0 : index
    %c0_43 = arith.constant 0 : index
    %66 = vector.load %arg14[%c0_42, %c0_43] : memref<576x128xf32, #tpu.memory_space<vmem>>, vector<576x128xf32>
    %cst_44 = arith.constant dense<0.000000e+00> : vector<8x128xf32>
    %67 = tpu.matmul %65, %66, %cst_44 {dimension_numbers = #tpu.dot_dimension_numbers<[1], [0], [0], [1], [0, 0, 1, 1], [], []>} : vector<8x576xf32>, vector<576x128xf32>, vector<8x128xf32> -> vector<8x128xf32>
    %c0_45 = arith.constant 0 : index
    %c0_46 = arith.constant 0 : index
    %68 = vector.load %arg15[%c0_45, %c0_46] : memref<1x128xf32, #tpu.memory_space<vmem>>, vector<1x128xf32>
    %69 = vector.broadcast %68 : vector<1x128xf32> to vector<8x128xf32>
    %70 = arith.addf %67, %69 : vector<8x128xf32>
    %cst_47 = arith.constant 0.000000e+00 : f32
    %71 = vector.broadcast %cst_47 : f32 to vector<8x128xf32>
    %72 = arith.maximumf %70, %71 : vector<8x128xf32>
    %c0_48 = arith.constant 0 : index
    %c0_49 = arith.constant 0 : index
    %73 = vector.load %arg16[%c0_48, %c0_49] : memref<128x128xf32, #tpu.memory_space<vmem>>, vector<128x128xf32>
    %cst_50 = arith.constant dense<0.000000e+00> : vector<8x128xf32>
    %74 = tpu.matmul %72, %73, %cst_50 {dimension_numbers = #tpu.dot_dimension_numbers<[1], [0], [0], [1], [0, 0, 1, 1], [], []>} : vector<8x128xf32>, vector<128x128xf32>, vector<8x128xf32> -> vector<8x128xf32>
    %c0_51 = arith.constant 0 : index
    %c0_52 = arith.constant 0 : index
    %75 = vector.load %arg17[%c0_51, %c0_52] : memref<1x128xf32, #tpu.memory_space<vmem>>, vector<1x128xf32>
    %76 = vector.broadcast %75 : vector<1x128xf32> to vector<8x128xf32>
    %77 = arith.addf %74, %76 : vector<8x128xf32>
    %cst_53 = arith.constant 0.000000e+00 : f32
    %78 = vector.broadcast %cst_53 : f32 to vector<8x128xf32>
    %79 = arith.maximumf %77, %78 : vector<8x128xf32>
    %c0_54 = arith.constant 0 : index
    %c0_55 = arith.constant 0 : index
    %80 = vector.load %arg18[%c0_54, %c0_55] : memref<128x128xf32, #tpu.memory_space<vmem>>, vector<128x128xf32>
    %cst_56 = arith.constant dense<0.000000e+00> : vector<8x128xf32>
    %81 = tpu.matmul %79, %80, %cst_56 {dimension_numbers = #tpu.dot_dimension_numbers<[1], [0], [0], [1], [0, 0, 1, 1], [], []>} : vector<8x128xf32>, vector<128x128xf32>, vector<8x128xf32> -> vector<8x128xf32>
    %c0_57 = arith.constant 0 : index
    %c0_58 = arith.constant 0 : index
    %82 = vector.load %arg19[%c0_57, %c0_58] : memref<1x128xf32, #tpu.memory_space<vmem>>, vector<1x128xf32>
    %83 = vector.broadcast %82 : vector<1x128xf32> to vector<8x128xf32>
    %84 = arith.addf %81, %83 : vector<8x128xf32>
    %85 = math.tanh %84 : vector<8x128xf32>
    %c0_59 = arith.constant 0 : index
    %c0_60 = arith.constant 0 : index
    %86 = vector.load %arg20[%c0_59, %c0_60] : memref<1x128xf32, #tpu.memory_space<vmem>>, vector<1x128xf32>
    %87 = vector.broadcast %86 : vector<1x128xf32> to vector<8x128xf32>
    %88 = arith.mulf %87, %85 : vector<8x128xf32>
    %c0_61 = arith.constant 0 : index
    %c0_62 = arith.constant 0 : index
    %89 = vector.load %arg21[%c0_61, %c0_62] : memref<8x128xf32, #tpu.memory_space<vmem>>, vector<8x128xf32>
    tpu.vector_store %arg21[%c0_61, %c0_62], %88 {strides = array<i32>} : memref<8x128xf32, #tpu.memory_space<vmem>>, vector<8x128xf32>,
    return
  }
  func.func @transform_0(%arg0: i32) -> (i32, i32) {
    %c0_i32 = arith.constant 0 : i32
    %c0_i32_0 = arith.constant 0 : i32
    return %arg0, %c0_i32 : i32, i32
  }
  func.func @transform_1(%arg0: i32) -> (i32, i32) {
    %c0_i32 = arith.constant 0 : i32
    %c0_i32_0 = arith.constant 0 : i32
    %c0_i32_1 = arith.constant 0 : i32
    return %c0_i32, %c0_i32_0 : i32, i32
  }
  func.func @transform_2(%arg0: i32) -> (i32, i32) {
    %c0_i32 = arith.constant 0 : i32
    %c0_i32_0 = arith.constant 0 : i32
    %c0_i32_1 = arith.constant 0 : i32
    return %c0_i32, %c0_i32_0 : i32, i32
  }
  func.func @transform_3(%arg0: i32) -> (i32, i32) {
    %c0_i32 = arith.constant 0 : i32
    %c0_i32_0 = arith.constant 0 : i32
    %c0_i32_1 = arith.constant 0 : i32
    return %c0_i32, %c0_i32_0 : i32, i32
  }
  func.func @transform_4(%arg0: i32) -> (i32, i32) {
    %c0_i32 = arith.constant 0 : i32
    %c0_i32_0 = arith.constant 0 : i32
    %c0_i32_1 = arith.constant 0 : i32
    return %c0_i32, %c0_i32_0 : i32, i32
  }
  func.func @transform_5(%arg0: i32) -> (i32, i32) {
    %c0_i32 = arith.constant 0 : i32
    %c0_i32_0 = arith.constant 0 : i32
    %c0_i32_1 = arith.constant 0 : i32
    return %c0_i32, %c0_i32_0 : i32, i32
  }
  func.func @transform_6(%arg0: i32) -> (i32, i32) {
    %c0_i32 = arith.constant 0 : i32
    %c0_i32_0 = arith.constant 0 : i32
    %c0_i32_1 = arith.constant 0 : i32
    return %c0_i32, %c0_i32_0 : i32, i32
  }
  func.func @transform_7(%arg0: i32) -> (i32, i32) {
    %c0_i32 = arith.constant 0 : i32
    %c0_i32_0 = arith.constant 0 : i32
    %c0_i32_1 = arith.constant 0 : i32
    return %c0_i32, %c0_i32_0 : i32, i32
  }
  func.func @transform_8(%arg0: i32) -> (i32, i32) {
    %c0_i32 = arith.constant 0 : i32
    %c0_i32_0 = arith.constant 0 : i32
    %c0_i32_1 = arith.constant 0 : i32
    return %c0_i32, %c0_i32_0 : i32, i32
  }
  func.func @transform_9(%arg0: i32) -> (i32, i32) {
    %c0_i32 = arith.constant 0 : i32
    %c0_i32_0 = arith.constant 0 : i32
    %c0_i32_1 = arith.constant 0 : i32
    return %c0_i32, %c0_i32_0 : i32, i32
  }
  func.func @transform_10(%arg0: i32) -> (i32, i32) {
    %c0_i32 = arith.constant 0 : i32
    %c0_i32_0 = arith.constant 0 : i32
    %c0_i32_1 = arith.constant 0 : i32
    return %c0_i32, %c0_i32_0 : i32, i32
  }
  func.func @transform_11(%arg0: i32) -> (i32, i32) {
    %c0_i32 = arith.constant 0 : i32
    %c0_i32_0 = arith.constant 0 : i32
    %c0_i32_1 = arith.constant 0 : i32
    return %c0_i32, %c0_i32_0 : i32, i32
  }
  func.func @transform_12(%arg0: i32) -> (i32, i32) {
    %c0_i32 = arith.constant 0 : i32
    %c0_i32_0 = arith.constant 0 : i32
    %c0_i32_1 = arith.constant 0 : i32
    return %c0_i32, %c0_i32_0 : i32, i32
  }
  func.func @transform_13(%arg0: i32) -> (i32, i32) {
    %c0_i32 = arith.constant 0 : i32
    %c0_i32_0 = arith.constant 0 : i32
    %c0_i32_1 = arith.constant 0 : i32
    return %c0_i32, %c0_i32_0 : i32, i32
  }
  func.func @transform_14(%arg0: i32) -> (i32, i32) {
    %c0_i32 = arith.constant 0 : i32
    %c0_i32_0 = arith.constant 0 : i32
    %c0_i32_1 = arith.constant 0 : i32
    return %c0_i32, %c0_i32_0 : i32, i32
  }
  func.func @transform_15(%arg0: i32) -> (i32, i32) {
    %c0_i32 = arith.constant 0 : i32
    %c0_i32_0 = arith.constant 0 : i32
    %c0_i32_1 = arith.constant 0 : i32
    return %c0_i32, %c0_i32_0 : i32, i32
  }
  func.func @transform_16(%arg0: i32) -> (i32, i32) {
    %c0_i32 = arith.constant 0 : i32
    %c0_i32_0 = arith.constant 0 : i32
    %c0_i32_1 = arith.constant 0 : i32
    return %c0_i32, %c0_i32_0 : i32, i32
  }
  func.func @transform_17(%arg0: i32) -> (i32, i32) {
    %c0_i32 = arith.constant 0 : i32
    %c0_i32_0 = arith.constant 0 : i32
    %c0_i32_1 = arith.constant 0 : i32
    return %c0_i32, %c0_i32_0 : i32, i32
  }
  func.func @transform_18(%arg0: i32) -> (i32, i32) {
    %c0_i32 = arith.constant 0 : i32
    %c0_i32_0 = arith.constant 0 : i32
    %c0_i32_1 = arith.constant 0 : i32
    return %c0_i32, %c0_i32_0 : i32, i32
  }
  func.func @transform_19(%arg0: i32) -> (i32, i32) {
    %c0_i32 = arith.constant 0 : i32
    %c0_i32_0 = arith.constant 0 : i32
    %c0_i32_1 = arith.constant 0 : i32
    return %c0_i32, %c0_i32_0 : i32, i32
  }
  func.func @transform_20(%arg0: i32) -> (i32, i32) {
    %c0_i32 = arith.constant 0 : i32
    %c0_i32_0 = arith.constant 0 : i32
    return %arg0, %c0_i32 : i32, i32
  }
}

</mosaic_0001>

<llo_original>
// kernel: tpu_custom_call.1
$region0: #{tpu_custom_call.1}
  #allocation0 [shape = 'u32[]', space=smem, size = 0x4, offset = 0x4, fixed_abs, tag = 'smem constant byte address 0x4 - core index']
  #allocation1 [shape = 'u32[144,128]{1,0:T(1,128)}', space=vmem, size = 0x12000, scoped, tag = 'internal scratch']
  %s0 = inlined_call_operand.hbm [shape: f32[8,39], index: 0, kind: input, shape index: {}]
  %s1 = inlined_call_operand.hbm [shape: f32[18,288], index: 1, kind: input, shape index: {}]
  %s2 = inlined_call_operand.hbm [shape: f32[1,288], index: 2, kind: input, shape index: {}]
  %s3 = inlined_call_operand.hbm [shape: f32[288,576], index: 3, kind: input, shape index: {}]
  %s4 = inlined_call_operand.hbm [shape: f32[1,576], index: 4, kind: input, shape index: {}]
  %s5 = inlined_call_operand.vmem [shape: f32[12,32], index: 5, kind: input, shape index: {}]
  %s6 = inlined_call_operand.hbm [shape: f32[1,32], index: 6, kind: input, shape index: {}]
  %s7 = inlined_call_operand.hbm [shape: f32[32,576], index: 7, kind: input, shape index: {}]
  %s8 = inlined_call_operand.hbm [shape: f32[1,576], index: 8, kind: input, shape index: {}]
  %s9 = inlined_call_operand.vmem [shape: f32[9,32], index: 9, kind: input, shape index: {}]
  %s10 = inlined_call_operand.hbm [shape: f32[1,32], index: 10, kind: input, shape index: {}]
  %s11 = inlined_call_operand.hbm [shape: f32[32,576], index: 11, kind: input, shape index: {}]
  %s12 = inlined_call_operand.vmem [shape: f32[1,576], index: 12, kind: input, shape index: {}]
  %s13 = inlined_call_operand.hbm [shape: f32[576,128], index: 13, kind: input, shape index: {}]
  %s14 = inlined_call_operand.vmem [shape: f32[1,128], index: 14, kind: input, shape index: {}]
  %s15 = inlined_call_operand.hbm [shape: f32[128,128], index: 15, kind: input, shape index: {}]
  %s16 = inlined_call_operand.vmem [shape: f32[1,128], index: 16, kind: input, shape index: {}]
  %s17 = inlined_call_operand.hbm [shape: f32[128,128], index: 17, kind: input, shape index: {}]
  %s18 = inlined_call_operand.vmem [shape: f32[1,128], index: 18, kind: input, shape index: {}]
  %s19 = inlined_call_operand.vmem [shape: f32[1,128], index: 19, kind: input, shape index: {}]
  %s20 = inlined_call_operand.hbm [shape: f32[8,128], index: 20, kind: output, shape index: {}]
  %s21 = sld [smem:[#allocation0]]
  $region142: #{tpu_custom_call.1} parent=0
    _
  %s23 = ssub.s32 1, %s21
  %s24 = scalar_select 0, %s23, %s21
  $region1: #{tpu_custom_call.1} parent=0
    #allocation2 [shape = 'u8[4096]{0}', space=vmem, size = 0x1000, scoped, tag = 'input window, operand 0, single buffered']
    #allocation3 [shape = 's32[1]{0}', space=sflag, size = 0x4, scoped, tag = 'scoped memory for tpu_custom_call.1']
    #allocation4 [shape = 's32[1]{0}', space=sflag, size = 0x4, scoped, tag = 'scoped memory for tpu_custom_call.1']
    #allocation5 [shape = 'u8[36864]{0}', space=vmem, size = 0x9000, scoped, tag = 'input window, operand 1, single buffered']
    #allocation6 [shape = 's32[1]{0}', space=sflag, size = 0x4, scoped, tag = 'scoped memory for tpu_custom_call.1']
    #allocation7 [shape = 'u8[1536]{0}', space=vmem, size = 0x800, scoped, tag = 'input window, operand 2, single buffered']
    #allocation8 [shape = 'u8[737280]{0}', space=vmem, size = 0xb4000, scoped, tag = 'input window, operand 3, single buffered']
    #allocation9 [shape = 's32[1]{0}', space=sflag, size = 0x4, scoped, tag = 'scoped memory for tpu_custom_call.1']
    #allocation10 [shape = 'u8[2560]{0}', space=vmem, size = 0xc00, scoped, tag = 'input window, operand 4, single buffered']
    #allocation11 [shape = 'u8[512]{0}', space=vmem, size = 0x400, scoped, tag = 'input window, operand 6, single buffered']
    #allocation12 [shape = 's32[1]{0}', space=sflag, size = 0x4, scoped, tag = 'scoped memory for tpu_custom_call.1']
    #allocation13 [shape = 'u8[81920]{0}', space=vmem, size = 0x14000, scoped, tag = 'input window, operand 7, single buffered']
    #allocation14 [shape = 'u8[2560]{0}', space=vmem, size = 0xc00, scoped, tag = 'input window, operand 8, single buffered']
    #allocation15 [shape = 's32[1]{0}', space=sflag, size = 0x4, scoped, tag = 'scoped memory for tpu_custom_call.1']
    #allocation16 [shape = 'u8[512]{0}', space=vmem, size = 0x400, scoped, tag = 'input window, operand 10, single buffered']
    #allocation17 [shape = 'u8[81920]{0}', space=vmem, size = 0x14000, scoped, tag = 'input window, operand 11, single buffered']
    #allocation18 [shape = 's32[1]{0}', space=sflag, size = 0x4, scoped, tag = 'scoped memory for tpu_custom_call.1']
    #allocation19 [shape = 'u8[294912]{0}', space=vmem, size = 0x48000, scoped, tag = 'input window, operand 13, single buffered']
    #allocation20 [shape = 'u8[65536]{0}', space=vmem, size = 0x10000, scoped, tag = 'input window, operand 15, single buffered']
    #allocation21 [shape = 's32[1]{0}', space=sflag, size = 0x4, scoped, tag = 'scoped memory for tpu_custom_call.1']
    #allocation22 [shape = 'u8[65536]{0}', space=vmem, size = 0x10000, scoped, tag = 'input window, operand 17, single buffered']
    #allocation23 [shape = 'u8[4096]{0}', space=vmem, size = 0x1000, scoped, tag = 'output window, operand 0, single buffered']
    %25 = vsyncpa [#allocation3], 0
    %26 = vsyncpa [#allocation6], 0
    %27 = vsyncpa [#allocation9], 0
    %28 = vsyncpa [#allocation12], 0
    %29 = vsyncpa [#allocation15], 0
    %30 = vsyncpa [#allocation18], 0
    %31 = vsyncpa [#allocation21], 0
    %32 = vsyncpa [#allocation4], 0
    // Predicated region
    $region2: #{tpu_custom_call.1} parent=1 // pred_check
      _
    $region3: #{tpu_custom_call.1} parent=1 // pred_check_branch
      %34 = sbr.rel (0) target = $region5
    $region4: #{tpu_custom_call.1} parent=1 // pred_region
      %s36 = ssub.s32 128, 128
      %37 = vsyncadd [#allocation3], %s36
      %s39 = sshll.u32 [#allocation2], 4
      %s40 = int_to_ptr.vmem [resolvable:$true] %s39
      %42 = dma.hbm_to_vmem [thread:$0]  %s0, 128, %s40, [#allocation3]
    $region5: #{tpu_custom_call.1} parent=1 // pred_fallthru
      _
    // Predicated region
    $region6: #{tpu_custom_call.1} parent=1 // pred_check
      _
    $region7: #{tpu_custom_call.1} parent=1 // pred_check_branch
      %44 = sbr.rel (0) target = $region9
    $region8: #{tpu_custom_call.1} parent=1 // pred_region
      %s46 = ssub.s32 1152, 1152
      %47 = vsyncadd [#allocation6], %s46
      %s48 = sshll.u32 [#allocation5], 4
      %s49 = int_to_ptr.vmem [resolvable:$true] %s48
      %54 = dma.hbm_to_vmem [thread:$0]  %s1, 1152, %s49, [#allocation6], 384, 384, 24
    $region9: #{tpu_custom_call.1} parent=1 // pred_fallthru
      _
    // Predicated region
    $region10: #{tpu_custom_call.1} parent=1 // pred_check
      _
    $region11: #{tpu_custom_call.1} parent=1 // pred_check_branch
      %56 = sbr.rel (0) target = $region13
    $region12: #{tpu_custom_call.1} parent=1 // pred_region
      %s58 = ssub.s32 48, 48
      %59 = vsyncadd [#allocation6], %s58
      %s61 = sshll.u32 [#allocation7], 4
      %s62 = int_to_ptr.vmem [resolvable:$true] %s61
      %64 = dma.hbm_to_vmem [thread:$0]  %s2, 48, %s62, [#allocation6]
    $region13: #{tpu_custom_call.1} parent=1 // pred_fallthru
      _
    // Predicated region
    $region14: #{tpu_custom_call.1} parent=1 // pred_check
      _
    $region15: #{tpu_custom_call.1} parent=1 // pred_check_branch
      %66 = sbr.rel (0) target = $region17
    $region16: #{tpu_custom_call.1} parent=1 // pred_region
      %s68 = ssub.s32 23040, 23040
      %69 = vsyncadd [#allocation9], %s68
      %s70 = sshll.u32 [#allocation8], 4
      %s71 = int_to_ptr.vmem [resolvable:$true] %s70
      %76 = dma.hbm_to_vmem [thread:$0]  %s3, 23040, %s71, [#allocation9], 640, 640, 40
    $region17: #{tpu_custom_call.1} parent=1 // pred_fallthru
      _
    // Predicated region
    $region18: #{tpu_custom_call.1} parent=1 // pred_check
      _
    $region19: #{tpu_custom_call.1} parent=1 // pred_check_branch
      %78 = sbr.rel (0) target = $region21
    $region20: #{tpu_custom_call.1} parent=1 // pred_region
      %s80 = ssub.s32 80, 80
      %81 = vsyncadd [#allocation9], %s80
      %s83 = sshll.u32 [#allocation10], 4
      %s84 = int_to_ptr.vmem [resolvable:$true] %s83
      %86 = dma.hbm_to_vmem [thread:$0]  %s4, 80, %s84, [#allocation9]
    $region21: #{tpu_custom_call.1} parent=1 // pred_fallthru
      _
    // Predicated region
    $region22: #{tpu_custom_call.1} parent=1 // pred_check
      _
    $region23: #{tpu_custom_call.1} parent=1 // pred_check_branch
      %88 = sbr.rel (0) target = $region25
    $region24: #{tpu_custom_call.1} parent=1 // pred_region
      _
    $region25: #{tpu_custom_call.1} parent=1 // pred_fallthru
      _
    // Predicated region
    $region26: #{tpu_custom_call.1} parent=1 // pred_check
      _
    $region27: #{tpu_custom_call.1} parent=1 // pred_check_branch
      %90 = sbr.rel (0) target = $region29
    $region28: #{tpu_custom_call.1} parent=1 // pred_region
      %s92 = ssub.s32 16, 16
      %93 = vsyncadd [#allocation12], %s92
      %s95 = sshll.u32 [#allocation11], 4
      %s96 = int_to_ptr.vmem [resolvable:$true] %s95
      %98 = dma.hbm_to_vmem [thread:$0]  %s6, 16, %s96, [#allocation12]
    $region29: #{tpu_custom_call.1} parent=1 // pred_fallthru
      _
    // Predicated region
    $region30: #{tpu_custom_call.1} parent=1 // pred_check
      _
    $region31: #{tpu_custom_call.1} parent=1 // pred_check_branch
      %100 = sbr.rel (0) target = $region33
    $region32: #{tpu_custom_call.1} parent=1 // pred_region
      %s102 = ssub.s32 2560, 2560
      %103 = vsyncadd [#allocation12], %s102
      %s104 = sshll.u32 [#allocation13], 4
      %s105 = int_to_ptr.vmem [resolvable:$true] %s104
      %110 = dma.hbm_to_vmem [thread:$0]  %s7, 2560, %s105, [#allocation12], 640, 640, 40
    $region33: #{tpu_custom_call.1} parent=1 // pred_fallthru
      _
    // Predicated region
    $region34: #{tpu_custom_call.1} parent=1 // pred_check
      _
    $region35: #{tpu_custom_call.1} parent=1 // pred_check_branch
      %112 = sbr.rel (0) target = $region37
    $region36: #{tpu_custom_call.1} parent=1 // pred_region
      %s114 = ssub.s32 80, 80
      %115 = vsyncadd [#allocation15], %s114
      %s117 = sshll.u32 [#allocation14], 4
      %s118 = int_to_ptr.vmem [resolvable:$true] %s117
      %120 = dma.hbm_to_vmem [thread:$0]  %s8, 80, %s118, [#allocation15]
    $region37: #{tpu_custom_call.1} parent=1 // pred_fallthru
      _
    // Predicated region
    $region38: #{tpu_custom_call.1} parent=1 // pred_check
      _
    $region39: #{tpu_custom_call.1} parent=1 // pred_check_branch
      %122 = sbr.rel (0) target = $region41
    $region40: #{tpu_custom_call.1} parent=1 // pred_region
      _
    $region41: #{tpu_custom_call.1} parent=1 // pred_fallthru
      _
    // Predicated region
    $region42: #{tpu_custom_call.1} parent=1 // pred_check
      _
    $region43: #{tpu_custom_call.1} parent=1 // pred_check_branch
      %124 = sbr.rel (0) target = $region45
    $region44: #{tpu_custom_call.1} parent=1 // pred_region
      %s126 = ssub.s32 16, 16
      %127 = vsyncadd [#allocation15], %s126
      %s129 = sshll.u32 [#allocation16], 4
      %s130 = int_to_ptr.vmem [resolvable:$true] %s129
      %132 = dma.hbm_to_vmem [thread:$0]  %s10, 16, %s130, [#allocation15]
    $region45: #{tpu_custom_call.1} parent=1 // pred_fallthru
      _
    // Predicated region
    $region46: #{tpu_custom_call.1} parent=1 // pred_check
      _
    $region47: #{tpu_custom_call.1} parent=1 // pred_check_branch
      %134 = sbr.rel (0) target = $region49
    $region48: #{tpu_custom_call.1} parent=1 // pred_region
      %s136 = ssub.s32 2560, 2560
      %137 = vsyncadd [#allocation18], %s136
      %s138 = sshll.u32 [#allocation17], 4
      %s139 = int_to_ptr.vmem [resolvable:$true] %s138
      %144 = dma.hbm_to_vmem [thread:$0]  %s11, 2560, %s139, [#allocation18], 640, 640, 40
    $region49: #{tpu_custom_call.1} parent=1 // pred_fallthru
      _
    // Predicated region
    $region50: #{tpu_custom_call.1} parent=1 // pred_check
      _
    $region51: #{tpu_custom_call.1} parent=1 // pred_check_branch
      %146 = sbr.rel (0) target = $region53
    $region52: #{tpu_custom_call.1} parent=1 // pred_region
      _
    $region53: #{tpu_custom_call.1} parent=1 // pred_fallthru
      _
    // Predicated region
    $region54: #{tpu_custom_call.1} parent=1 // pred_check
      _
    $region55: #{tpu_custom_call.1} parent=1 // pred_check_branch
      %148 = sbr.rel (0) target = $region57
    $region56: #{tpu_custom_call.1} parent=1 // pred_region
      %s150 = ssub.s32 9216, 9216
      %151 = vsyncadd [#allocation18], %s150
      %s152 = sshll.u32 [#allocation19], 4
      %s153 = int_to_ptr.vmem [resolvable:$true] %s152
      %158 = dma.hbm_to_vmem [thread:$0]  %s13, 9216, %s153, [#allocation18], 128, 128, 8
    $region57: #{tpu_custom_call.1} parent=1 // pred_fallthru
      _
    // Predicated region
    $region58: #{tpu_custom_call.1} parent=1 // pred_check
      _
    $region59: #{tpu_custom_call.1} parent=1 // pred_check_branch
      %160 = sbr.rel (0) target = $region61
    $region60: #{tpu_custom_call.1} parent=1 // pred_region
      _
    $region61: #{tpu_custom_call.1} parent=1 // pred_fallthru
      _
    // Predicated region
    $region62: #{tpu_custom_call.1} parent=1 // pred_check
      _
    $region63: #{tpu_custom_call.1} parent=1 // pred_check_branch
      %162 = sbr.rel (0) target = $region65
    $region64: #{tpu_custom_call.1} parent=1 // pred_region
      %s164 = ssub.s32 2048, 2048
      %165 = vsyncadd [#allocation21], %s164
      %s166 = sshll.u32 [#allocation20], 4
      %s167 = int_to_ptr.vmem [resolvable:$true] %s166
      %172 = dma.hbm_to_vmem [thread:$0]  %s15, 2048, %s167, [#allocation21], 128, 128, 8
    $region65: #{tpu_custom_call.1} parent=1 // pred_fallthru
      _
    // Predicated region
    $region66: #{tpu_custom_call.1} parent=1 // pred_check
      _
    $region67: #{tpu_custom_call.1} parent=1 // pred_check_branch
      %174 = sbr.rel (0) target = $region69
    $region68: #{tpu_custom_call.1} parent=1 // pred_region
      _
    $region69: #{tpu_custom_call.1} parent=1 // pred_fallthru
      _
    // Predicated region
    $region70: #{tpu_custom_call.1} parent=1 // pred_check
      _
    $region71: #{tpu_custom_call.1} parent=1 // pred_check_branch
      %176 = sbr.rel (0) target = $region73
    $region72: #{tpu_custom_call.1} parent=1 // pred_region
      %s178 = ssub.s32 2048, 2048
      %179 = vsyncadd [#allocation21], %s178
      %s180 = sshll.u32 [#allocation22], 4
      %s181 = int_to_ptr.vmem [resolvable:$true] %s180
      %186 = dma.hbm_to_vmem [thread:$0]  %s17, 2048, %s181, [#allocation21], 128, 128, 8
    $region73: #{tpu_custom_call.1} parent=1 // pred_fallthru
      _
    // Predicated region
    $region74: #{tpu_custom_call.1} parent=1 // pred_check
      _
    $region75: #{tpu_custom_call.1} parent=1 // pred_check_branch
      %188 = sbr.rel (0) target = $region77
    $region76: #{tpu_custom_call.1} parent=1 // pred_region
      _
    $region77: #{tpu_custom_call.1} parent=1 // pred_fallthru
      _
    // Predicated region
    $region78: #{tpu_custom_call.1} parent=1 // pred_check
      _
    $region79: #{tpu_custom_call.1} parent=1 // pred_check_branch
      %190 = sbr.rel (0) target = $region81
    $region80: #{tpu_custom_call.1} parent=1 // pred_region
      _
    $region81: #{tpu_custom_call.1} parent=1 // pred_fallthru
      _
    // Predicated region
    $region82: #{tpu_custom_call.1} parent=1 // pred_check
      _
    $region83: #{tpu_custom_call.1} parent=1 // pred_check_branch
      %192 = sbr.rel (0) target = $region85
    $region84: #{tpu_custom_call.1} parent=1 // pred_region
      %193 = dma.done [#allocation3], 128
    $region85: #{tpu_custom_call.1} parent=1 // pred_fallthru
      _
    // Predicated region
    $region86: #{tpu_custom_call.1} parent=1 // pred_check
      _
    $region87: #{tpu_custom_call.1} parent=1 // pred_check_branch
      %195 = sbr.rel (0) target = $region89
    $region88: #{tpu_custom_call.1} parent=1 // pred_region
      %196 = dma.done [#allocation6], 1152
    $region89: #{tpu_custom_call.1} parent=1 // pred_fallthru
      _
    // Predicated region
    $region90: #{tpu_custom_call.1} parent=1 // pred_check
      _
    $region91: #{tpu_custom_call.1} parent=1 // pred_check_branch
      %198 = sbr.rel (0) target = $region93
    $region92: #{tpu_custom_call.1} parent=1 // pred_region
      %199 = dma.done [#allocation6], 48
    $region93: #{tpu_custom_call.1} parent=1 // pred_fallthru
      _
    // Predicated region
    $region94: #{tpu_custom_call.1} parent=1 // pred_check
      _
    $region95: #{tpu_custom_call.1} parent=1 // pred_check_branch
      %201 = sbr.rel (0) target = $region97
    $region96: #{tpu_custom_call.1} parent=1 // pred_region
      %202 = dma.done [#allocation9], 23040
    $region97: #{tpu_custom_call.1} parent=1 // pred_fallthru
      _
    // Predicated region
    $region98: #{tpu_custom_call.1} parent=1 // pred_check
      _
    $region99: #{tpu_custom_call.1} parent=1 // pred_check_branch
      %204 = sbr.rel (0) target = $region101
    $region100: #{tpu_custom_call.1} parent=1 // pred_region
      %205 = dma.done [#allocation9], 80
    $region101: #{tpu_custom_call.1} parent=1 // pred_fallthru
      _
    // Predicated region
    $region102: #{tpu_custom_call.1} parent=1 // pred_check
      _
    $region103: #{tpu_custom_call.1} parent=1 // pred_check_branch
      %207 = sbr.rel (0) target = $region105
    $region104: #{tpu_custom_call.1} parent=1 // pred_region
      %208 = dma.done [#allocation12], 16
    $region105: #{tpu_custom_call.1} parent=1 // pred_fallthru
      _
    // Predicated region
    $region106: #{tpu_custom_call.1} parent=1 // pred_check
      _
    $region107: #{tpu_custom_call.1} parent=1 // pred_check_branch
      %210 = sbr.rel (0) target = $region109
    $region108: #{tpu_custom_call.1} parent=1 // pred_region
      %211 = dma.done [#allocation12], 2560
    $region109: #{tpu_custom_call.1} parent=1 // pred_fallthru
      _
    // Predicated region
    $region110: #{tpu_custom_call.1} parent=1 // pred_check
      _
    $region111: #{tpu_custom_call.1} parent=1 // pred_check_branch
      %213 = sbr.rel (0) target = $region113
    $region112: #{tpu_custom_call.1} parent=1 // pred_region
      %214 = dma.done [#allocation15], 80
    $region113: #{tpu_custom_call.1} parent=1 // pred_fallthru
      _
    // Predicated region
    $region114: #{tpu_custom_call.1} parent=1 // pred_check
      _
    $region115: #{tpu_custom_call.1} parent=1 // pred_check_branch
      %216 = sbr.rel (0) target = $region117
    $region116: #{tpu_custom_call.1} parent=1 // pred_region
      %217 = dma.done [#allocation15], 16
    $region117: #{tpu_custom_call.1} parent=1 // pred_fallthru
      _
    // Predicated region
    $region118: #{tpu_custom_call.1} parent=1 // pred_check
      _
    $region119: #{tpu_custom_call.1} parent=1 // pred_check_branch
      %219 = sbr.rel (0) target = $region121
    $region120: #{tpu_custom_call.1} parent=1 // pred_region
      %220 = dma.done [#allocation18], 2560
    $region121: #{tpu_custom_call.1} parent=1 // pred_fallthru
      _
    // Predicated region
    $region122: #{tpu_custom_call.1} parent=1 // pred_check
      _
    $region123: #{tpu_custom_call.1} parent=1 // pred_check_branch
      %222 = sbr.rel (0) target = $region125
    $region124: #{tpu_custom_call.1} parent=1 // pred_region
      %223 = dma.done [#allocation18], 9216
    $region125: #{tpu_custom_call.1} parent=1 // pred_fallthru
      _
    // Predicated region
    $region126: #{tpu_custom_call.1} parent=1 // pred_check
      _
    $region127: #{tpu_custom_call.1} parent=1 // pred_check_branch
      %225 = sbr.rel (0) target = $region129
    $region128: #{tpu_custom_call.1} parent=1 // pred_region
      %226 = dma.done [#allocation21], 2048
    $region129: #{tpu_custom_call.1} parent=1 // pred_fallthru
      _
    // Predicated region
    $region130: #{tpu_custom_call.1} parent=1 // pred_check
      _
    $region131: #{tpu_custom_call.1} parent=1 // pred_check_branch
      %228 = sbr.rel (0) target = $region133
    $region132: #{tpu_custom_call.1} parent=1 // pred_region
      %229 = dma.done [#allocation21], 2048
    $region133: #{tpu_custom_call.1} parent=1 // pred_fallthru
      _
    %v230 = vld [vmem:[#allocation2] sm:$0xff]
    %v231 = vld [vmem:[#allocation5] sm:$0xff]
    %v232 = vld [vmem:[#allocation5 + $0x8] sm:$0xff]
    %v233 = vld [vmem:[#allocation5 + $0x10] sm:$0xff]
    %v234 = vld [vmem:[#allocation5 + $0x18] sm:$0xff]
    %v235 = vld [vmem:[#allocation5 + $0x20] sm:$0xff]
    %v236 = vld [vmem:[#allocation5 + $0x28] sm:$0xff]
    %v237 = vld [vmem:[#allocation5 + $0x30] sm:$0x3]
    %v238 = vld [vmem:[#allocation5 + $0x38] sm:$0x3]
    %v239 = vld [vmem:[#allocation5 + $0x40] sm:$0x3]
    %v240 = vld [vmem:[#allocation7] sm:$0x7]
    %v242 = vlaneseq
    %v243 = vshrl.u32 %v242, 7
    %v244 = vsub.s32 0, %v243
    %v245 = vrot.slane %v240, %v244
    %v246 = vlaneseq
    %v247 = vshrl.u32 %v246, 7
    %v248 = vsub.s32 1, %v247
    %v249 = vrot.slane %v240, %v248
    %v250 = vlaneseq
    %v251 = vshrl.u32 %v250, 7
    %v252 = vsub.s32 2, %v251
    %v253 = vrot.slane %v240, %v252
    %vm257 = vcmask 146432
    %v259 = vsel %vm257, %v230, 0
    %vm261 = vcmask 1041408
    %v263 = vsel %vm261, %v237, 0
    %v266 = vsel %vm261, %v238, 0
    %v269 = vsel %vm261, %v239, 0
    %271 = vmatprep.subr.mxu0 %v232
    %272 = vmatpush1.msra.mxu0 %v231
    %273 = vmatprep.subr.mxu0 %v235
    %274 = vmatpush1.msra.mxu0 %v234
    %275 = vmatprep.subr.mxu0 %v266
    %276 = vmatpush1.msra.mxu0 %v263
    %277 = vmatprep.subr.mxu0 0.0
    %278 = vmatpush1.msra.mxu0 0.0
    %279 = vmatprep.subr.mxu0 0.0
    %280 = vmatpush1.msra.mxu0 0.0
    %281 = vmatprep.subr.mxu0 0.0
    %282 = vmatpush1.msra.mxu0 0.0
    %283 = vmatprep.subr.mxu0 0.0
    %284 = vmatpush1.msra.mxu0 0.0
    %285 = vmatprep.subr.mxu0 0.0
    %286 = vmatpush1.msra.mxu0 0.0
    %287 = vmatprep.subr.mxu0 0.0
    %288 = vmatpush1.msra.mxu0 0.0
    %289 = vmatprep.subr.mxu0 0.0
    %290 = vmatpush1.msra.mxu0 0.0
    %291 = vmatprep.subr.mxu0 0.0
    %292 = vmatpush1.msra.mxu0 0.0
    %293 = vmatprep.subr.mxu0 0.0
    %294 = vmatpush1.msra.mxu0 0.0
    %295 = vmatprep.subr.mxu0 0.0
    %296 = vmatpush1.msra.mxu0 0.0
    %297 = vmatprep.subr.mxu0 0.0
    %298 = vmatpush1.msra.mxu0 0.0
    %299 = vmatprep.subr.mxu0 0.0
    %300 = vmatpush1.msra.mxu0 0.0
    %301 = vmatprep.subr.mxu0 0.0
    %302 = vmatpush1.msra.mxu0 0.0
    %303 = vmatprep.subr.mxu0 0.0
    %304 = vmatpush1.msra.mxu0 0.0
    %305 = vmatprep.subr.mxu0 0.0
    %306 = vmatpush1.msra.mxu0 0.0
    %307 = vmatprep.subr.mxu0 0.0
    %308 = vmatpush1.msra.mxu0 0.0
    %309 = vmatprep.subr.mxu0 0.0
    %310 = vmatpush1.msra.mxu0 0.0
    %311 = vmatprep.subr.mxu0 0.0
    %312 = vmatpush1.msra.mxu0 0.0
    %313 = vmatprep.subr.mxu0 0.0
    %314 = vmatpush1.msra.mxu0 0.0
    %315 = vmatprep.subr.mxu0 0.0
    %316 = vmatpush1.msra.mxu0 0.0
    %317 = vmatprep.subr.mxu0 0.0
    %318 = vmatpush1.msra.mxu0 0.0
    %319 = vmatprep.subr.mxu0 0.0
    %320 = vmatpush1.msra.mxu0 0.0
    %321 = vmatprep.subr.mxu0 0.0
    %322 = vmatpush1.msra.mxu0 0.0
    %323 = vmatprep.subr.mxu0 0.0
    %324 = vmatpush1.msra.mxu0 0.0
    %325 = vmatprep.subr.mxu0 0.0
    %326 = vmatpush1.msra.mxu0 0.0
    %327 = vmatprep.subr.mxu0 0.0
    %328 = vmatpush1.msra.mxu0 0.0
    %329 = vmatprep.subr.mxu0 0.0
    %330 = vmatpush1.msra.mxu0 0.0
    %331 = vmatprep.subr.mxu0 0.0
    %332 = vmatpush1.msra.mxu0 0.0
    %333 = vmatprep.subr.mxu0 0.0
    %334 = vmatpush1.msra.mxu0 0.0
    %335 = vmatprep.mubr.f32.mxu0 0.0
    %336 = vmatmul.mubr.f32.gmra.mrb[0].mxu0 %v259
    %v337 = vpop.f32.mrb[0].mxu0
    %v338 = vadd.f32 %v245, %v337
    %v339 = vpop.f32.mrb[0].mxu0
    %v340 = vadd.f32 %v249, %v339
    %341 = vdwg.mxu0
    %342 = vmatprep.subr.mxu0 0.0
    %343 = vmatpush1.msra.mxu0 %v233
    %344 = vmatprep.subr.mxu0 0.0
    %345 = vmatpush1.msra.mxu0 %v236
    %346 = vmatprep.subr.mxu0 0.0
    %347 = vmatpush1.msra.mxu0 %v269
    %348 = vmatprep.subr.mxu0 0.0
    %349 = vmatpush1.msra.mxu0 0.0
    %350 = vmatprep.subr.mxu0 0.0
    %351 = vmatpush1.msra.mxu0 0.0
    %352 = vmatprep.subr.mxu0 0.0
    %353 = vmatpush1.msra.mxu0 0.0
    %354 = vmatprep.subr.mxu0 0.0
    %355 = vmatpush1.msra.mxu0 0.0
    %356 = vmatprep.subr.mxu0 0.0
    %357 = vmatpush1.msra.mxu0 0.0
    %358 = vmatprep.subr.mxu0 0.0
    %359 = vmatpush1.msra.mxu0 0.0
    %360 = vmatprep.subr.mxu0 0.0
    %361 = vmatpush1.msra.mxu0 0.0
    %362 = vmatprep.subr.mxu0 0.0
    %363 = vmatpush1.msra.mxu0 0.0
    %364 = vmatprep.subr.mxu0 0.0
    %365 = vmatpush1.msra.mxu0 0.0
    %366 = vmatprep.subr.mxu0 0.0
    %367 = vmatpush1.msra.mxu0 0.0
    %368 = vmatprep.subr.mxu0 0.0
    %369 = vmatpush1.msra.mxu0 0.0
    %370 = vmatprep.subr.mxu0 0.0
    %371 = vmatpush1.msra.mxu0 0.0
    %372 = vmatprep.subr.mxu0 0.0
    %373 = vmatpush1.msra.mxu0 0.0
    %374 = vmatprep.subr.mxu0 0.0
    %375 = vmatpush1.msra.mxu0 0.0
    %376 = vmatprep.subr.mxu0 0.0
    %377 = vmatpush1.msra.mxu0 0.0
    %378 = vmatprep.subr.mxu0 0.0
    %379 = vmatpush1.msra.mxu0 0.0
    %380 = vmatprep.subr.mxu0 0.0
    %381 = vmatpush1.msra.mxu0 0.0
    %382 = vmatprep.subr.mxu0 0.0
    %383 = vmatpush1.msra.mxu0 0.0
    %384 = vmatprep.subr.mxu0 0.0
    %385 = vmatpush1.msra.mxu0 0.0
    %386 = vmatprep.subr.mxu0 0.0
    %387 = vmatpush1.msra.mxu0 0.0
    %388 = vmatprep.subr.mxu0 0.0
    %389 = vmatpush1.msra.mxu0 0.0
    %390 = vmatprep.subr.mxu0 0.0
    %391 = vmatpush1.msra.mxu0 0.0
    %392 = vmatprep.subr.mxu0 0.0
    %393 = vmatpush1.msra.mxu0 0.0
    %394 = vmatprep.subr.mxu0 0.0
    %395 = vmatpush1.msra.mxu0 0.0
    %396 = vmatprep.subr.mxu0 0.0
    %397 = vmatpush1.msra.mxu0 0.0
    %398 = vmatprep.subr.mxu0 0.0
    %399 = vmatpush1.msra.mxu0 0.0
    %400 = vmatprep.subr.mxu0 0.0
    %401 = vmatpush1.msra.mxu0 0.0
    %402 = vmatprep.subr.mxu0 0.0
    %403 = vmatpush1.msra.mxu0 0.0
    %404 = vmatprep.subr.mxu0 0.0
    %405 = vmatpush1.msra.mxu0 0.0
    %406 = vmatprep.mubr.f32.mxu0 0.0
    %407 = vmatmul.mubr.f32.gmra.mrb[0].mxu0 %v259
    %v408 = vpop.f32.mrb[0].mxu0
    %v409 = vadd.f32 %v253, %v408
    %v410 = vpop.f32.mrb[0].mxu0
    %411 = vdwg.mxu0
    %vm412 = vcmp.gt.f32.partialorder %v338, 0.0
    %vm413 = vcmp.gt.f32.partialorder %v340, 0.0
    %vm414 = vcmp.gt.f32.partialorder %v409, 0.0
    %v415 = vmul.f32 %v338, 0.01
    %v416 = vmul.f32 %v340, 0.01
    %v417 = vmul.f32 %v409, 0.01
    %v418 = vsel %vm412, %v338, %v415
    %v419 = vsel %vm413, %v340, %v416
    %v420 = vsel %vm414, %v409, %v417
    %v421 = vld [vmem:[#allocation8] sm:$0xff]
    %v422 = vld [vmem:[#allocation8 + $0x8] sm:$0xff]
    %v423 = vld [vmem:[#allocation8 + $0x10] sm:$0xff]
    %v424 = vld [vmem:[#allocation8 + $0x18] sm:$0xff]
    %v425 = vld [vmem:[#allocation8 + $0x20] sm:$0xff]
    %v426 = vld [vmem:[#allocation8 + $0x28] sm:$0xff]
    %v427 = vld [vmem:[#allocation8 + $0x30] sm:$0xff]
    %v428 = vld [vmem:[#allocation8 + $0x38] sm:$0xff]
    %v429 = vld [vmem:[#allocation8 + $0x40] sm:$0xff]
    %v430 = vld [vmem:[#allocation8 + $0x48] sm:$0xff]
    %v431 = vld [vmem:[#allocation8 + $0x50] sm:$0xff]
    %v432 = vld [vmem:[#allocation8 + $0x58] sm:$0xff]
    %v433 = vld [vmem:[#allocation8 + $0x60] sm:$0xff]
    %v434 = vld [vmem:[#allocation8 + $0x68] sm:$0xff]
    %v435 = vld [vmem:[#allocation8 + $0x70] sm:$0xff]
    %v436 = vld [vmem:[#allocation8 + $0x78] sm:$0xff]
    %v437 = vld [vmem:[#allocation8 + $0x80] sm:$0xff]
    %v438 = vld [vmem:[#allocation8 + $0x88] sm:$0xff]
    %v439 = vld [vmem:[#allocation8 + $0x90] sm:$0xff]
    %v440 = vld [vmem:[#allocation8 + $0x98] sm:$0xff]
    %v441 = vld [vmem:[#allocation8 + $0xa0] sm:$0xff]
    %v442 = vld [vmem:[#allocation8 + $0xa8] sm:$0xff]
    %v443 = vld [vmem:[#allocation8 + $0xb0] sm:$0xff]
    %v444 = vld [vmem:[#allocation8 + $0xb8] sm:$0xff]
    %v445 = vld [vmem:[#allocation8 + $0xc0] sm:$0xff]
    %v446 = vld [vmem:[#allocation8 + $0xc8] sm:$0xff]
    %v447 = vld [vmem:[#allocation8 + $0xd0] sm:$0xff]
    %v448 = vld [vmem:[#allocation8 + $0xd8] sm:$0xff]
    %v449 = vld [vmem:[#allocation8 + $0xe0] sm:$0xff]
    %v450 = vld [vmem:[#allocation8 + $0xe8] sm:$0xff]
    %v451 = vld [vmem:[#allocation8 + $0xf0] sm:$0xff]
    %v452 = vld [vmem:[#allocation8 + $0xf8] sm:$0xff]
    %v453 = vld [vmem:[#allocation8 + $0x100] sm:$0xff]
    %v454 = vld [vmem:[#allocation8 + $0x108] sm:$0xff]
    %v455 = vld [vmem:[#allocation8 + $0x110] sm:$0xff]
    %v456 = vld [vmem:[#allocation8 + $0x118] sm:$0xff]
    %v457 = vld [vmem:[#allocation8 + $0x120] sm:$0xff]
    %v458 = vld [vmem:[#allocation8 + $0x128] sm:$0xff]
    %v459 = vld [vmem:[#allocation8 + $0x130] sm:$0xff]
    %v460 = vld [vmem:[#allocation8 + $0x138] sm:$0xff]
    %v461 = vld [vmem:[#allocation8 + $0x140] sm:$0xff]
    %v462 = vld [vmem:[#allocation8 + $0x148] sm:$0xff]
    %v463 = vld [vmem:[#allocation8 + $0x150] sm:$0xff]
    %v464 = vld [vmem:[#allocation8 + $0x158] sm:$0xff]
    %v465 = vld [vmem:[#allocation8 + $0x160] sm:$0xff]
    %v466 = vld [vmem:[#allocation8 + $0x168] sm:$0xff]
    %v467 = vld [vmem:[#allocation8 + $0x170] sm:$0xff]
    %v468 = vld [vmem:[#allocation8 + $0x178] sm:$0xff]
    %v469 = vld [vmem:[#allocation8 + $0x180] sm:$0xff]
    %v470 = vld [vmem:[#allocation8 + $0x188] sm:$0xff]
    %v471 = vld [vmem:[#allocation8 + $0x190] sm:$0xff]
    %v472 = vld [vmem:[#allocation8 + $0x198] sm:$0xff]
    %v473 = vld [vmem:[#allocation8 + $0x1a0] sm:$0xff]
    %v474 = vld [vmem:[#allocation8 + $0x1a8] sm:$0xff]
    %v475 = vld [vmem:[#allocation8 + $0x1b0] sm:$0xff]
    %v476 = vld [vmem:[#allocation8 + $0x1b8] sm:$0xff]
    %v477 = vld [vmem:[#allocation8 + $0x1c0] sm:$0xff]
    %v478 = vld [vmem:[#allocation8 + $0x1c8] sm:$0xff]
    %v479 = vld [vmem:[#allocation8 + $0x1d0] sm:$0xff]
    %v480 = vld [vmem:[#allocation8 + $0x1d8] sm:$0xff]
    %v481 = vld [vmem:[#allocation8 + $0x1e0] sm:$0xff]
    %v482 = vld [vmem:[#allocation8 + $0x1e8] sm:$0xff]
    %v483 = vld [vmem:[#allocation8 + $0x1f0] sm:$0xff]
    %v484 = vld [vmem:[#allocation8 + $0x1f8] sm:$0xff]
    %v485 = vld [vmem:[#allocation8 + $0x200] sm:$0xff]
    %v486 = vld [vmem:[#allocation8 + $0x208] sm:$0xff]
    %v487 = vld [vmem:[#allocation8 + $0x210] sm:$0xff]
    %v488 = vld [vmem:[#allocation8 + $0x218] sm:$0xff]
    %v489 = vld [vmem:[#allocation8 + $0x220] sm:$0xff]
    %v490 = vld [vmem:[#allocation8 + $0x228] sm:$0xff]
    %v491 = vld [vmem:[#allocation8 + $0x230] sm:$0xff]
    %v492 = vld [vmem:[#allocation8 + $0x238] sm:$0xff]
    %v493 = vld [vmem:[#allocation8 + $0x240] sm:$0xff]
    %v494 = vld [vmem:[#allocation8 + $0x248] sm:$0xff]
    %v495 = vld [vmem:[#allocation8 + $0x250] sm:$0xff]
    %v496 = vld [vmem:[#allocation8 + $0x258] sm:$0xff]
    %v497 = vld [vmem:[#allocation8 + $0x260] sm:$0xff]
    %v498 = vld [vmem:[#allocation8 + $0x268] sm:$0xff]
    %v499 = vld [vmem:[#allocation8 + $0x270] sm:$0xff]
    %v500 = vld [vmem:[#allocation8 + $0x278] sm:$0xff]
    %v501 = vld [vmem:[#allocation8 + $0x280] sm:$0xff]
    %v502 = vld [vmem:[#allocation8 + $0x288] sm:$0xff]
    %v503 = vld [vmem:[#allocation8 + $0x290] sm:$0xff]
    %v504 = vld [vmem:[#allocation8 + $0x298] sm:$0xff]
    %v505 = vld [vmem:[#allocation8 + $0x2a0] sm:$0xff]
    %v506 = vld [vmem:[#allocation8 + $0x2a8] sm:$0xff]
    %v507 = vld [vmem:[#allocation8 + $0x2b0] sm:$0xff]
    %v508 = vld [vmem:[#allocation8 + $0x2b8] sm:$0xff]
    %v509 = vld [vmem:[#allocation8 + $0x2c0] sm:$0xff]
    %v510 = vld [vmem:[#allocation8 + $0x2c8] sm:$0xff]
    %v511 = vld [vmem:[#allocation8 + $0x2d0] sm:$0xff]
    %v512 = vld [vmem:[#allocation8 + $0x2d8] sm:$0xff]
    %v513 = vld [vmem:[#allocation8 + $0x2e0] sm:$0xff]
    %v514 = vld [vmem:[#allocation8 + $0x2e8] sm:$0xff]
    %v515 = vld [vmem:[#allocation8 + $0x2f0] sm:$0xff]
    %v516 = vld [vmem:[#allocation8 + $0x2f8] sm:$0xff]
    %v517 = vld [vmem:[#allocation8 + $0x300] sm:$0xff]
    %v518 = vld [vmem:[#allocation8 + $0x308] sm:$0xff]
    %v519 = vld [vmem:[#allocation8 + $0x310] sm:$0xff]
    %v520 = vld [vmem:[#allocation8 + $0x318] sm:$0xff]
    %v521 = vld [vmem:[#allocation8 + $0x320] sm:$0xff]
    %v522 = vld [vmem:[#allocation8 + $0x328] sm:$0xff]
    %v523 = vld [vmem:[#allocation8 + $0x330] sm:$0xff]
    %v524 = vld [vmem:[#allocation8 + $0x338] sm:$0xff]
    %v525 = vld [vmem:[#allocation8 + $0x340] sm:$0xff]
    %v526 = vld [vmem:[#allocation8 + $0x348] sm:$0xff]
    %v527 = vld [vmem:[#allocation8 + $0x350] sm:$0xff]
    %v528 = vld [vmem:[#allocation8 + $0x358] sm:$0xff]
    %v529 = vld [vmem:[#allocation8 + $0x360] sm:$0xff]
    %v530 = vld [vmem:[#allocation8 + $0x368] sm:$0xff]
    %v531 = vld [vmem:[#allocation8 + $0x370] sm:$0xff]
    %v532 = vld [vmem:[#allocation8 + $0x378] sm:$0xff]
    %v533 = vld [vmem:[#allocation8 + $0x380] sm:$0xff]
    %v534 = vld [vmem:[#allocation8 + $0x388] sm:$0xff]
    %v535 = vld [vmem:[#allocation8 + $0x390] sm:$0xff]
    %v536 = vld [vmem:[#allocation8 + $0x398] sm:$0xff]
    %v537 = vld [vmem:[#allocation8 + $0x3a0] sm:$0xff]
    %v538 = vld [vmem:[#allocation8 + $0x3a8] sm:$0xff]
    %v539 = vld [vmem:[#allocation8 + $0x3b0] sm:$0xff]
    %v540 = vld [vmem:[#allocation8 + $0x3b8] sm:$0xff]
    %v541 = vld [vmem:[#allocation8 + $0x3c0] sm:$0xff]
    %v542 = vld [vmem:[#allocation8 + $0x3c8] sm:$0xff]
    %v543 = vld [vmem:[#allocation8 + $0x3d0] sm:$0xff]
    %v544 = vld [vmem:[#allocation8 + $0x3d8] sm:$0xff]
    %v545 = vld [vmem:[#allocation8 + $0x3e0] sm:$0xff]
    %v546 = vld [vmem:[#allocation8 + $0x3e8] sm:$0xff]
    %v547 = vld [vmem:[#allocation8 + $0x3f0] sm:$0xff]
    %v548 = vld [vmem:[#allocation8 + $0x3f8] sm:$0xff]
    %v549 = vld [vmem:[#allocation8 + $0x400] sm:$0xff]
    %v550 = vld [vmem:[#allocation8 + $0x408] sm:$0xff]
    %v551 = vld [vmem:[#allocation8 + $0x410] sm:$0xff]
    %v552 = vld [vmem:[#allocation8 + $0x418] sm:$0xff]
    %v553 = vld [vmem:[#allocation8 + $0x420] sm:$0xff]
    %v554 = vld [vmem:[#allocation8 + $0x428] sm:$0xff]
    %v555 = vld [vmem:[#allocation8 + $0x430] sm:$0xff]
    %v556 = vld [vmem:[#allocation8 + $0x438] sm:$0xff]
    %v557 = vld [vmem:[#allocation8 + $0x440] sm:$0xff]
    %v558 = vld [vmem:[#allocation8 + $0x448] sm:$0xff]
    %v559 = vld [vmem:[#allocation8 + $0x450] sm:$0xff]
    %v560 = vld [vmem:[#allocation8 + $0x458] sm:$0xff]
    %v561 = vld [vmem:[#allocation8 + $0x460] sm:$0xff]
    %v562 = vld [vmem:[#allocation8 + $0x468] sm:$0xff]
    %v563 = vld [vmem:[#allocation8 + $0x470] sm:$0xff]
    %v564 = vld [vmem:[#allocation8 + $0x478] sm:$0xff]
    %v565 = vld [vmem:[#allocation8 + $0x480] sm:$0xff]
    %v566 = vld [vmem:[#allocation8 + $0x488] sm:$0xff]
    %v567 = vld [vmem:[#allocation8 + $0x490] sm:$0xff]
    %v568 = vld [vmem:[#allocation8 + $0x498] sm:$0xff]
    %v569 = vld [vmem:[#allocation8 + $0x4a0] sm:$0xff]
    %v570 = vld [vmem:[#allocation8 + $0x4a8] sm:$0xff]
    %v571 = vld [vmem:[#allocation8 + $0x4b0] sm:$0xff]
    %v572 = vld [vmem:[#allocation8 + $0x4b8] sm:$0xff]
    %v573 = vld [vmem:[#allocation8 + $0x4c0] sm:$0xff]
    %v574 = vld [vmem:[#allocation8 + $0x4c8] sm:$0xff]
    %v575 = vld [vmem:[#allocation8 + $0x4d0] sm:$0xff]
    %v576 = vld [vmem:[#allocation8 + $0x4d8] sm:$0xff]
    %v577 = vld [vmem:[#allocation8 + $0x4e0] sm:$0xff]
    %v578 = vld [vmem:[#allocation8 + $0x4e8] sm:$0xff]
    %v579 = vld [vmem:[#allocation8 + $0x4f0] sm:$0xff]
    %v580 = vld [vmem:[#allocation8 + $0x4f8] sm:$0xff]
    %v581 = vld [vmem:[#allocation8 + $0x500] sm:$0xff]
    %v582 = vld [vmem:[#allocation8 + $0x508] sm:$0xff]
    %v583 = vld [vmem:[#allocation8 + $0x510] sm:$0xff]
    %v584 = vld [vmem:[#allocation8 + $0x518] sm:$0xff]
    %v585 = vld [vmem:[#allocation8 + $0x520] sm:$0xff]
    %v586 = vld [vmem:[#allocation8 + $0x528] sm:$0xff]
    %v587 = vld [vmem:[#allocation8 + $0x530] sm:$0xff]
    %v588 = vld [vmem:[#allocation8 + $0x538] sm:$0xff]
    %v589 = vld [vmem:[#allocation8 + $0x540] sm:$0xff]
    %v590 = vld [vmem:[#allocation8 + $0x548] sm:$0xff]
    %v591 = vld [vmem:[#allocation8 + $0x550] sm:$0xff]
    %v592 = vld [vmem:[#allocation8 + $0x558] sm:$0xff]
    %v593 = vld [vmem:[#allocation8 + $0x560] sm:$0xff]
    %v594 = vld [vmem:[#allocation8 + $0x568] sm:$0xff]
    %v595 = vld [vmem:[#allocation8 + $0x570] sm:$0xff]
    %v596 = vld [vmem:[#allocation8 + $0x578] sm:$0xff]
    %v597 = vld [vmem:[#allocation8 + $0x580] sm:$0xff]
    %v598 = vld [vmem:[#allocation8 + $0x588] sm:$0xff]
    %v599 = vld [vmem:[#allocation8 + $0x590] sm:$0xff]
    %v600 = vld [vmem:[#allocation8 + $0x598] sm:$0xff]
    %v601 = vld [vmem:[#allocation10] sm:$0x1f]
    %v603 = vlaneseq
    %v604 = vshrl.u32 %v603, 7
    %v605 = vsub.s32 0, %v604
    %v606 = vrot.slane %v601, %v605
    %v607 = vlaneseq
    %v608 = vshrl.u32 %v607, 7
    %v609 = vsub.s32 1, %v608
    %v610 = vrot.slane %v601, %v609
    %v611 = vlaneseq
    %v612 = vshrl.u32 %v611, 7
    %v613 = vsub.s32 2, %v612
    %v614 = vrot.slane %v601, %v613
    %v615 = vlaneseq
    %v616 = vshrl.u32 %v615, 7
    %v617 = vsub.s32 3, %v616
    %v618 = vrot.slane %v601, %v617
    %v619 = vlaneseq
    %v620 = vshrl.u32 %v619, 7
    %v621 = vsub.s32 4, %v620
    %v622 = vrot.slane %v601, %v621
    %vm628 = vcmask 261120
    %v630 = vsel %vm628, %v420, 0
    %632 = vmatprep.subr.mxu0 %v422
    %633 = vmatpush1.msra.mxu0 %v421
    %634 = vmatprep.subr.mxu0 %v427
    %635 = vmatpush1.msra.mxu0 %v426
    %636 = vmatprep.subr.mxu0 %v432
    %637 = vmatpush1.msra.mxu0 %v431
    %638 = vmatprep.subr.mxu0 %v437
    %639 = vmatpush1.msra.mxu0 %v436
    %640 = vmatprep.subr.mxu0 %v442
    %641 = vmatpush1.msra.mxu0 %v441
    %642 = vmatprep.subr.mxu0 %v447
    %643 = vmatpush1.msra.mxu0 %v446
    %644 = vmatprep.subr.mxu0 %v452
    %645 = vmatpush1.msra.mxu0 %v451
    %646 = vmatprep.subr.mxu0 %v457
    %647 = vmatpush1.msra.mxu0 %v456
    %648 = vmatprep.subr.mxu0 %v462
    %649 = vmatpush1.msra.mxu0 %v461
    %650 = vmatprep.subr.mxu0 %v467
    %651 = vmatpush1.msra.mxu0 %v466
    %652 = vmatprep.subr.mxu0 %v472
    %653 = vmatpush1.msra.mxu0 %v471
    %654 = vmatprep.subr.mxu0 %v477
    %655 = vmatpush1.msra.mxu0 %v476
    %656 = vmatprep.subr.mxu0 %v482
    %657 = vmatpush1.msra.mxu0 %v481
    %658 = vmatprep.subr.mxu0 %v487
    %659 = vmatpush1.msra.mxu0 %v486
    %660 = vmatprep.subr.mxu0 %v492
    %661 = vmatpush1.msra.mxu0 %v491
    %662 = vmatprep.subr.mxu0 %v497
    %663 = vmatpush1.msra.mxu0 %v496
    %664 = vmatprep.subr.mxu0 %v502
    %665 = vmatpush1.msra.mxu0 %v501
    %666 = vmatprep.subr.mxu0 %v507
    %667 = vmatpush1.msra.mxu0 %v506
    %668 = vmatprep.subr.mxu0 %v512
    %669 = vmatpush1.msra.mxu0 %v511
    %670 = vmatprep.subr.mxu0 %v517
    %671 = vmatpush1.msra.mxu0 %v516
    %672 = vmatprep.subr.mxu0 %v522
    %673 = vmatpush1.msra.mxu0 %v521
    %674 = vmatprep.subr.mxu0 %v527
    %675 = vmatpush1.msra.mxu0 %v526
    %676 = vmatprep.subr.mxu0 %v532
    %677 = vmatpush1.msra.mxu0 %v531
    %678 = vmatprep.subr.mxu0 %v537
    %679 = vmatpush1.msra.mxu0 %v536
    %680 = vmatprep.subr.mxu0 %v542
    %681 = vmatpush1.msra.mxu0 %v541
    %682 = vmatprep.subr.mxu0 %v547
    %683 = vmatpush1.msra.mxu0 %v546
    %684 = vmatprep.subr.mxu0 %v552
    %685 = vmatpush1.msra.mxu0 %v551
    %686 = vmatprep.subr.mxu0 %v557
    %687 = vmatpush1.msra.mxu0 %v556
    %688 = vmatprep.subr.mxu0 %v562
    %689 = vmatpush1.msra.mxu0 %v561
    %690 = vmatprep.subr.mxu0 %v567
    %691 = vmatpush1.msra.mxu0 %v566
    %692 = vmatprep.subr.mxu0 %v572
    %693 = vmatpush1.msra.mxu0 %v571
    %694 = vmatprep.subr.mxu0 %v577
    %695 = vmatpush1.msra.mxu0 %v576
    %696 = vmatprep.mubr.f32.mxu0 %v419
    %697 = vmatmul.mubr.f32.gmra.mrb[0].mxu0 %v418
    %v698 = vpop.f32.mrb[0].mxu0
    %v699 = vadd.f32 %v606, %v698
    %v700 = vpop.f32.mrb[0].mxu0
    %v701 = vadd.f32 %v610, %v700
    %702 = vdwg.mxu0
    %703 = vmatprep.subr.mxu0 %v582
    %704 = vmatpush1.msra.mxu0 %v581
    %705 = vmatprep.subr.mxu0 %v587
    %706 = vmatpush1.msra.mxu0 %v586
    %707 = vmatprep.subr.mxu0 %v592
    %708 = vmatpush1.msra.mxu0 %v591
    %709 = vmatprep.subr.mxu0 %v597
    %710 = vmatpush1.msra.mxu0 %v596
    %711 = vmatprep.subr.mxu0 0.0
    %712 = vmatpush1.msra.mxu0 0.0
    %713 = vmatprep.subr.mxu0 0.0
    %714 = vmatpush1.msra.mxu0 0.0
    %715 = vmatprep.subr.mxu0 0.0
    %716 = vmatpush1.msra.mxu0 0.0
    %717 = vmatprep.subr.mxu0 0.0
    %718 = vmatpush1.msra.mxu0 0.0
    %719 = vmatprep.subr.mxu0 0.0
    %720 = vmatpush1.msra.mxu0 0.0
    %721 = vmatprep.subr.mxu0 0.0
    %722 = vmatpush1.msra.mxu0 0.0
    %723 = vmatprep.subr.mxu0 0.0
    %724 = vmatpush1.msra.mxu0 0.0
    %725 = vmatprep.subr.mxu0 0.0
    %726 = vmatpush1.msra.mxu0 0.0
    %727 = vmatprep.subr.mxu0 0.0
    %728 = vmatpush1.msra.mxu0 0.0
    %729 = vmatprep.subr.mxu0 0.0
    %730 = vmatpush1.msra.mxu0 0.0
    %731 = vmatprep.subr.mxu0 0.0
    %732 = vmatpush1.msra.mxu0 0.0
    %733 = vmatprep.subr.mxu0 0.0
    %734 = vmatpush1.msra.mxu0 0.0
    %735 = vmatprep.subr.mxu0 0.0
    %736 = vmatpush1.msra.mxu0 0.0
    %737 = vmatprep.subr.mxu0 0.0
    %738 = vmatpush1.msra.mxu0 0.0
    %739 = vmatprep.subr.mxu0 0.0
    %740 = vmatpush1.msra.mxu0 0.0
    %741 = vmatprep.subr.mxu0 0.0
    %742 = vmatpush1.msra.mxu0 0.0
    %743 = vmatprep.subr.mxu0 0.0
    %744 = vmatpush1.msra.mxu0 0.0
    %745 = vmatprep.subr.mxu0 0.0
    %746 = vmatpush1.msra.mxu0 0.0
    %747 = vmatprep.subr.mxu0 0.0
    %748 = vmatpush1.msra.mxu0 0.0
    %749 = vmatprep.subr.mxu0 0.0
    %750 = vmatpush1.msra.mxu0 0.0
    %751 = vmatprep.subr.mxu0 0.0
    %752 = vmatpush1.msra.mxu0 0.0
    %753 = vmatprep.subr.mxu0 0.0
    %754 = vmatpush1.msra.mxu0 0.0
    %755 = vmatprep.subr.mxu0 0.0
    %756 = vmatpush1.msra.mxu0 0.0
    %757 = vmatprep.subr.mxu0 0.0
    %758 = vmatpush1.msra.mxu0 0.0
    %759 = vmatprep.subr.mxu0 0.0
    %760 = vmatpush1.msra.mxu0 0.0
    %761 = vmatprep.subr.mxu0 0.0
    %762 = vmatpush1.msra.mxu0 0.0
    %763 = vmatprep.subr.mxu0 0.0
    %764 = vmatpush1.msra.mxu0 0.0
    %765 = vmatprep.subr.mxu0 0.0
    %766 = vmatpush1.msra.mxu0 0.0
    %767 = vmatprep.mubr.f32.mxu0 0.0
    %768 = vmatmul.mubr.f32.gmra.mrb[0].mxu0 %v630
    %v769 = vpop.f32.mrb[0].mxu0
    %v770 = vadd.f32 %v699, %v769
    %v771 = vpop.f32.mrb[0].mxu0
    %v772 = vadd.f32 %v701, %v771
    %773 = vdwg.mxu0
    %774 = vmatprep.subr.mxu0 %v424
    %775 = vmatpush1.msra.mxu0 %v423
    %776 = vmatprep.subr.mxu0 %v429
    %777 = vmatpush1.msra.mxu0 %v428
    %778 = vmatprep.subr.mxu0 %v434
    %779 = vmatpush1.msra.mxu0 %v433
    %780 = vmatprep.subr.mxu0 %v439
    %781 = vmatpush1.msra.mxu0 %v438
    %782 = vmatprep.subr.mxu0 %v444
    %783 = vmatpush1.msra.mxu0 %v443
    %784 = vmatprep.subr.mxu0 %v449
    %785 = vmatpush1.msra.mxu0 %v448
    %786 = vmatprep.subr.mxu0 %v454
    %787 = vmatpush1.msra.mxu0 %v453
    %788 = vmatprep.subr.mxu0 %v459
    %789 = vmatpush1.msra.mxu0 %v458
    %790 = vmatprep.subr.mxu0 %v464
    %791 = vmatpush1.msra.mxu0 %v463
    %792 = vmatprep.subr.mxu0 %v469
    %793 = vmatpush1.msra.mxu0 %v468
    %794 = vmatprep.subr.mxu0 %v474
    %795 = vmatpush1.msra.mxu0 %v473
    %796 = vmatprep.subr.mxu0 %v479
    %797 = vmatpush1.msra.mxu0 %v478
    %798 = vmatprep.subr.mxu0 %v484
    %799 = vmatpush1.msra.mxu0 %v483
    %800 = vmatprep.subr.mxu0 %v489
    %801 = vmatpush1.msra.mxu0 %v488
    %802 = vmatprep.subr.mxu0 %v494
    %803 = vmatpush1.msra.mxu0 %v493
    %804 = vmatprep.subr.mxu0 %v499
    %805 = vmatpush1.msra.mxu0 %v498
    %806 = vmatprep.subr.mxu0 %v504
    %807 = vmatpush1.msra.mxu0 %v503
    %808 = vmatprep.subr.mxu0 %v509
    %809 = vmatpush1.msra.mxu0 %v508
    %810 = vmatprep.subr.mxu0 %v514
    %811 = vmatpush1.msra.mxu0 %v513
    %812 = vmatprep.subr.mxu0 %v519
    %813 = vmatpush1.msra.mxu0 %v518
    %814 = vmatprep.subr.mxu0 %v524
    %815 = vmatpush1.msra.mxu0 %v523
    %816 = vmatprep.subr.mxu0 %v529
    %817 = vmatpush1.msra.mxu0 %v528
    %818 = vmatprep.subr.mxu0 %v534
    %819 = vmatpush1.msra.mxu0 %v533
    %820 = vmatprep.subr.mxu0 %v539
    %821 = vmatpush1.msra.mxu0 %v538
    %822 = vmatprep.subr.mxu0 %v544
    %823 = vmatpush1.msra.mxu0 %v543
    %824 = vmatprep.subr.mxu0 %v549
    %825 = vmatpush1.msra.mxu0 %v548
    %826 = vmatprep.subr.mxu0 %v554
    %827 = vmatpush1.msra.mxu0 %v553
    %828 = vmatprep.subr.mxu0 %v559
    %829 = vmatpush1.msra.mxu0 %v558
    %830 = vmatprep.subr.mxu0 %v564
    %831 = vmatpush1.msra.mxu0 %v563
    %832 = vmatprep.subr.mxu0 %v569
    %833 = vmatpush1.msra.mxu0 %v568
    %834 = vmatprep.subr.mxu0 %v574
    %835 = vmatpush1.msra.mxu0 %v573
    %836 = vmatprep.subr.mxu0 %v579
    %837 = vmatpush1.msra.mxu0 %v578
    %838 = vmatprep.mubr.f32.mxu0 %v419
    %839 = vmatmul.mubr.f32.gmra.mrb[0].mxu0 %v418
    %v840 = vpop.f32.mrb[0].mxu0
    %v841 = vadd.f32 %v614, %v840
    %v842 = vpop.f32.mrb[0].mxu0
    %v843 = vadd.f32 %v618, %v842
    %844 = vdwg.mxu0
    %845 = vmatprep.subr.mxu0 %v584
    %846 = vmatpush1.msra.mxu0 %v583
    %847 = vmatprep.subr.mxu0 %v589
    %848 = vmatpush1.msra.mxu0 %v588
    %849 = vmatprep.subr.mxu0 %v594
    %850 = vmatpush1.msra.mxu0 %v593
    %851 = vmatprep.subr.mxu0 %v599
    %852 = vmatpush1.msra.mxu0 %v598
    %853 = vmatprep.subr.mxu0 0.0
    %854 = vmatpush1.msra.mxu0 0.0
    %855 = vmatprep.subr.mxu0 0.0
    %856 = vmatpush1.msra.mxu0 0.0
    %857 = vmatprep.subr.mxu0 0.0
    %858 = vmatpush1.msra.mxu0 0.0
    %859 = vmatprep.subr.mxu0 0.0
    %860 = vmatpush1.msra.mxu0 0.0
    %861 = vmatprep.subr.mxu0 0.0
    %862 = vmatpush1.msra.mxu0 0.0
    %863 = vmatprep.subr.mxu0 0.0
    %864 = vmatpush1.msra.mxu0 0.0
    %865 = vmatprep.subr.mxu0 0.0
    %866 = vmatpush1.msra.mxu0 0.0
    %867 = vmatprep.subr.mxu0 0.0
    %868 = vmatpush1.msra.mxu0 0.0
    %869 = vmatprep.subr.mxu0 0.0
    %870 = vmatpush1.msra.mxu0 0.0
    %871 = vmatprep.subr.mxu0 0.0
    %872 = vmatpush1.msra.mxu0 0.0
    %873 = vmatprep.subr.mxu0 0.0
    %874 = vmatpush1.msra.mxu0 0.0
    %875 = vmatprep.subr.mxu0 0.0
    %876 = vmatpush1.msra.mxu0 0.0
    %877 = vmatprep.subr.mxu0 0.0
    %878 = vmatpush1.msra.mxu0 0.0
    %879 = vmatprep.subr.mxu0 0.0
    %880 = vmatpush1.msra.mxu0 0.0
    %881 = vmatprep.subr.mxu0 0.0
    %882 = vmatpush1.msra.mxu0 0.0
    %883 = vmatprep.subr.mxu0 0.0
    %884 = vmatpush1.msra.mxu0 0.0
    %885 = vmatprep.subr.mxu0 0.0
    %886 = vmatpush1.msra.mxu0 0.0
    %887 = vmatprep.subr.mxu0 0.0
    %888 = vmatpush1.msra.mxu0 0.0
    %889 = vmatprep.subr.mxu0 0.0
    %890 = vmatpush1.msra.mxu0 0.0
    %891 = vmatprep.subr.mxu0 0.0
    %892 = vmatpush1.msra.mxu0 0.0
    %893 = vmatprep.subr.mxu0 0.0
    %894 = vmatpush1.msra.mxu0 0.0
    %895 = vmatprep.subr.mxu0 0.0
    %896 = vmatpush1.msra.mxu0 0.0
    %897 = vmatprep.subr.mxu0 0.0
    %898 = vmatpush1.msra.mxu0 0.0
    %899 = vmatprep.subr.mxu0 0.0
    %900 = vmatpush1.msra.mxu0 0.0
    %901 = vmatprep.subr.mxu0 0.0
    %902 = vmatpush1.msra.mxu0 0.0
    %903 = vmatprep.subr.mxu0 0.0
    %904 = vmatpush1.msra.mxu0 0.0
    %905 = vmatprep.subr.mxu0 0.0
    %906 = vmatpush1.msra.mxu0 0.0
    %907 = vmatprep.subr.mxu0 0.0
    %908 = vmatpush1.msra.mxu0 0.0
    %909 = vmatprep.mubr.f32.mxu0 0.0
    %910 = vmatmul.mubr.f32.gmra.mrb[0].mxu0 %v630
    %v911 = vpop.f32.mrb[0].mxu0
    %v912 = vadd.f32 %v841, %v911
    %v913 = vpop.f32.mrb[0].mxu0
    %v914 = vadd.f32 %v843, %v913
    %915 = vdwg.mxu0
    %916 = vmatprep.subr.mxu0 0.0
    %917 = vmatpush1.msra.mxu0 %v425
    %918 = vmatprep.subr.mxu0 0.0
    %919 = vmatpush1.msra.mxu0 %v430
    %920 = vmatprep.subr.mxu0 0.0
    %921 = vmatpush1.msra.mxu0 %v435
    %922 = vmatprep.subr.mxu0 0.0
    %923 = vmatpush1.msra.mxu0 %v440
    %924 = vmatprep.subr.mxu0 0.0
    %925 = vmatpush1.msra.mxu0 %v445
    %926 = vmatprep.subr.mxu0 0.0
    %927 = vmatpush1.msra.mxu0 %v450
    %928 = vmatprep.subr.mxu0 0.0
    %929 = vmatpush1.msra.mxu0 %v455
    %930 = vmatprep.subr.mxu0 0.0
    %931 = vmatpush1.msra.mxu0 %v460
    %932 = vmatprep.subr.mxu0 0.0
    %933 = vmatpush1.msra.mxu0 %v465
    %934 = vmatprep.subr.mxu0 0.0
    %935 = vmatpush1.msra.mxu0 %v470
    %936 = vmatprep.subr.mxu0 0.0
    %937 = vmatpush1.msra.mxu0 %v475
    %938 = vmatprep.subr.mxu0 0.0
    %939 = vmatpush1.msra.mxu0 %v480
    %940 = vmatprep.subr.mxu0 0.0
    %941 = vmatpush1.msra.mxu0 %v485
    %942 = vmatprep.subr.mxu0 0.0
    %943 = vmatpush1.msra.mxu0 %v490
    %944 = vmatprep.subr.mxu0 0.0
    %945 = vmatpush1.msra.mxu0 %v495
    %946 = vmatprep.subr.mxu0 0.0
    %947 = vmatpush1.msra.mxu0 %v500
    %948 = vmatprep.subr.mxu0 0.0
    %949 = vmatpush1.msra.mxu0 %v505
    %950 = vmatprep.subr.mxu0 0.0
    %951 = vmatpush1.msra.mxu0 %v510
    %952 = vmatprep.subr.mxu0 0.0
    %953 = vmatpush1.msra.mxu0 %v515
    %954 = vmatprep.subr.mxu0 0.0
    %955 = vmatpush1.msra.mxu0 %v520
    %956 = vmatprep.subr.mxu0 0.0
    %957 = vmatpush1.msra.mxu0 %v525
    %958 = vmatprep.subr.mxu0 0.0
    %959 = vmatpush1.msra.mxu0 %v530
    %960 = vmatprep.subr.mxu0 0.0
    %961 = vmatpush1.msra.mxu0 %v535
    %962 = vmatprep.subr.mxu0 0.0
    %963 = vmatpush1.msra.mxu0 %v540
    %964 = vmatprep.subr.mxu0 0.0
    %965 = vmatpush1.msra.mxu0 %v545
    %966 = vmatprep.subr.mxu0 0.0
    %967 = vmatpush1.msra.mxu0 %v550
    %968 = vmatprep.subr.mxu0 0.0
    %969 = vmatpush1.msra.mxu0 %v555
    %970 = vmatprep.subr.mxu0 0.0
    %971 = vmatpush1.msra.mxu0 %v560
    %972 = vmatprep.subr.mxu0 0.0
    %973 = vmatpush1.msra.mxu0 %v565
    %974 = vmatprep.subr.mxu0 0.0
    %975 = vmatpush1.msra.mxu0 %v570
    %976 = vmatprep.subr.mxu0 0.0
    %977 = vmatpush1.msra.mxu0 %v575
    %978 = vmatprep.subr.mxu0 0.0
    %979 = vmatpush1.msra.mxu0 %v580
    %980 = vmatprep.mubr.f32.mxu0 %v419
    %981 = vmatmul.mubr.f32.gmra.mrb[0].mxu0 %v418
    %v982 = vpop.f32.mrb[0].mxu0
    %v983 = vadd.f32 %v622, %v982
    %v984 = vpop.f32.mrb[0].mxu0
    %985 = vdwg.mxu0
    %986 = vmatprep.subr.mxu0 0.0
    %987 = vmatpush1.msra.mxu0 %v585
    %988 = vmatprep.subr.mxu0 0.0
    %989 = vmatpush1.msra.mxu0 %v590
    %990 = vmatprep.subr.mxu0 0.0
    %991 = vmatpush1.msra.mxu0 %v595
    %992 = vmatprep.subr.mxu0 0.0
    %993 = vmatpush1.msra.mxu0 %v600
    %994 = vmatprep.subr.mxu0 0.0
    %995 = vmatpush1.msra.mxu0 0.0
    %996 = vmatprep.subr.mxu0 0.0
    %997 = vmatpush1.msra.mxu0 0.0
    %998 = vmatprep.subr.mxu0 0.0
    %999 = vmatpush1.msra.mxu0 0.0
    %1000 = vmatprep.subr.mxu0 0.0
    %1001 = vmatpush1.msra.mxu0 0.0
    %1002 = vmatprep.subr.mxu0 0.0
    %1003 = vmatpush1.msra.mxu0 0.0
    %1004 = vmatprep.subr.mxu0 0.0
    %1005 = vmatpush1.msra.mxu0 0.0
    %1006 = vmatprep.subr.mxu0 0.0
    %1007 = vmatpush1.msra.mxu0 0.0
    %1008 = vmatprep.subr.mxu0 0.0
    %1009 = vmatpush1.msra.mxu0 0.0
    %1010 = vmatprep.subr.mxu0 0.0
    %1011 = vmatpush1.msra.mxu0 0.0
    %1012 = vmatprep.subr.mxu0 0.0
    %1013 = vmatpush1.msra.mxu0 0.0
    %1014 = vmatprep.subr.mxu0 0.0
    %1015 = vmatpush1.msra.mxu0 0.0
    %1016 = vmatprep.subr.mxu0 0.0
    %1017 = vmatpush1.msra.mxu0 0.0
    %1018 = vmatprep.subr.mxu0 0.0
    %1019 = vmatpush1.msra.mxu0 0.0
    %1020 = vmatprep.subr.mxu0 0.0
    %1021 = vmatpush1.msra.mxu0 0.0
    %1022 = vmatprep.subr.mxu0 0.0
    %1023 = vmatpush1.msra.mxu0 0.0
    %1024 = vmatprep.subr.mxu0 0.0
    %1025 = vmatpush1.msra.mxu0 0.0
    %1026 = vmatprep.subr.mxu0 0.0
    %1027 = vmatpush1.msra.mxu0 0.0
    %1028 = vmatprep.subr.mxu0 0.0
    %1029 = vmatpush1.msra.mxu0 0.0
    %1030 = vmatprep.subr.mxu0 0.0
    %1031 = vmatpush1.msra.mxu0 0.0
    %1032 = vmatprep.subr.mxu0 0.0
    %1033 = vmatpush1.msra.mxu0 0.0
    %1034 = vmatprep.subr.mxu0 0.0
    %1035 = vmatpush1.msra.mxu0 0.0
    %1036 = vmatprep.subr.mxu0 0.0
    %1037 = vmatpush1.msra.mxu0 0.0
    %1038 = vmatprep.subr.mxu0 0.0
    %1039 = vmatpush1.msra.mxu0 0.0
    %1040 = vmatprep.subr.mxu0 0.0
    %1041 = vmatpush1.msra.mxu0 0.0
    %1042 = vmatprep.subr.mxu0 0.0
    %1043 = vmatpush1.msra.mxu0 0.0
    %1044 = vmatprep.subr.mxu0 0.0
    %1045 = vmatpush1.msra.mxu0 0.0
    %1046 = vmatprep.subr.mxu0 0.0
    %1047 = vmatpush1.msra.mxu0 0.0
    %1048 = vmatprep.subr.mxu0 0.0
    %1049 = vmatpush1.msra.mxu0 0.0
    %1050 = vmatprep.mubr.f32.mxu0 0.0
    %1051 = vmatmul.mubr.f32.gmra.mrb[0].mxu0 %v630
    %v1052 = vpop.f32.mrb[0].mxu0
    %v1053 = vadd.f32 %v983, %v1052
    %v1054 = vpop.f32.mrb[0].mxu0
    %1055 = vdwg.mxu0
    %vm1056 = vcmp.gt.f32.partialorder %v770, 0.0
    %vm1057 = vcmp.gt.f32.partialorder %v772, 0.0
    %vm1058 = vcmp.gt.f32.partialorder %v912, 0.0
    %vm1059 = vcmp.gt.f32.partialorder %v914, 0.0
    %vm1060 = vcmp.gt.f32.partialorder %v1053, 0.0
    %v1061 = vmul.f32 %v770, 0.01
    %v1062 = vmul.f32 %v772, 0.01
    %v1063 = vmul.f32 %v912, 0.01
    %v1064 = vmul.f32 %v914, 0.01
    %v1065 = vmul.f32 %v1053, 0.01
    %v1066 = vsel %vm1056, %v770, %v1061
    %v1067 = vsel %vm1057, %v772, %v1062
    %v1068 = vsel %vm1058, %v912, %v1063
    %v1069 = vsel %vm1059, %v914, %v1064
    %v1070 = vsel %vm1060, %v1053, %v1065
    %v1071 = vld [vmem:[%s5] sm:$0xff]
    %v1072 = vld [vmem:[%s5 + $0x8] sm:$0xf]
    %v1073 = vld [vmem:[#allocation11] sm:$0x1]
    %v1075 = vlaneseq
    %v1076 = vshrl.u32 %v1075, 7
    %v1077 = vsub.s32 0, %v1076
    %v1078 = vrot.slane %v1073, %v1077
    %1081 = vrot.lane.b32.xlu0 %v1066, 110
    %v1082 = vpop.permute.xlu0 %1081
    %vm1083 = vcmask 97280
    %v1084 = vsel %vm1083, %v1082, 0
    %vm1086 = vcmask 1043456
    %v1088 = vsel %vm1086, %v1072, 0
    %1090 = vmatprep.subr.mxu0 0.0
    %1091 = vmatpush1.msra.mxu0 %v1071
    %1092 = vmatprep.subr.mxu0 0.0
    %1093 = vmatpush1.msra.mxu0 %v1088
    %1094 = vmatprep.subr.mxu0 0.0
    %1095 = vmatpush1.msra.mxu0 0.0
    %1096 = vmatprep.subr.mxu0 0.0
    %1097 = vmatpush1.msra.mxu0 0.0
    %1098 = vmatprep.subr.mxu0 0.0
    %1099 = vmatpush1.msra.mxu0 0.0
    %1100 = vmatprep.subr.mxu0 0.0
    %1101 = vmatpush1.msra.mxu0 0.0
    %1102 = vmatprep.subr.mxu0 0.0
    %1103 = vmatpush1.msra.mxu0 0.0
    %1104 = vmatprep.subr.mxu0 0.0
    %1105 = vmatpush1.msra.mxu0 0.0
    %1106 = vmatprep.subr.mxu0 0.0
    %1107 = vmatpush1.msra.mxu0 0.0
    %1108 = vmatprep.subr.mxu0 0.0
    %1109 = vmatpush1.msra.mxu0 0.0
    %1110 = vmatprep.subr.mxu0 0.0
    %1111 = vmatpush1.msra.mxu0 0.0
    %1112 = vmatprep.subr.mxu0 0.0
    %1113 = vmatpush1.msra.mxu0 0.0
    %1114 = vmatprep.subr.mxu0 0.0
    %1115 = vmatpush1.msra.mxu0 0.0
    %1116 = vmatprep.subr.mxu0 0.0
    %1117 = vmatpush1.msra.mxu0 0.0
    %1118 = vmatprep.subr.mxu0 0.0
    %1119 = vmatpush1.msra.mxu0 0.0
    %1120 = vmatprep.subr.mxu0 0.0
    %1121 = vmatpush1.msra.mxu0 0.0
    %1122 = vmatprep.subr.mxu0 0.0
    %1123 = vmatpush1.msra.mxu0 0.0
    %1124 = vmatprep.subr.mxu0 0.0
    %1125 = vmatpush1.msra.mxu0 0.0
    %1126 = vmatprep.subr.mxu0 0.0
    %1127 = vmatpush1.msra.mxu0 0.0
    %1128 = vmatprep.subr.mxu0 0.0
    %1129 = vmatpush1.msra.mxu0 0.0
    %1130 = vmatprep.subr.mxu0 0.0
    %1131 = vmatpush1.msra.mxu0 0.0
    %1132 = vmatprep.subr.mxu0 0.0
    %1133 = vmatpush1.msra.mxu0 0.0
    %1134 = vmatprep.subr.mxu0 0.0
    %1135 = vmatpush1.msra.mxu0 0.0
    %1136 = vmatprep.subr.mxu0 0.0
    %1137 = vmatpush1.msra.mxu0 0.0
    %1138 = vmatprep.subr.mxu0 0.0
    %1139 = vmatpush1.msra.mxu0 0.0
    %1140 = vmatprep.subr.mxu0 0.0
    %1141 = vmatpush1.msra.mxu0 0.0
    %1142 = vmatprep.subr.mxu0 0.0
    %1143 = vmatpush1.msra.mxu0 0.0
    %1144 = vmatprep.subr.mxu0 0.0
    %1145 = vmatpush1.msra.mxu0 0.0
    %1146 = vmatprep.subr.mxu0 0.0
    %1147 = vmatpush1.msra.mxu0 0.0
    %1148 = vmatprep.subr.mxu0 0.0
    %1149 = vmatpush1.msra.mxu0 0.0
    %1150 = vmatprep.subr.mxu0 0.0
    %1151 = vmatpush1.msra.mxu0 0.0
    %1152 = vmatprep.subr.mxu0 0.0
    %1153 = vmatpush1.msra.mxu0 0.0
    %1154 = vmatprep.mubr.f32.mxu0 0.0
    %1155 = vmatmul.mubr.f32.gmra.mrb[0].mxu0 %v1084
    %v1156 = vpop.f32.mrb[0].mxu0
    %v1157 = vadd.f32 %v1078, %v1156
    %v1158 = vpop.f32.mrb[0].mxu0
    %1159 = vdwg.mxu0
    %vm1160 = vcmp.gt.f32.partialorder %v1157, 0.0
    %v1161 = vmul.f32 %v1157, 0.01
    %v1162 = vsel %vm1160, %v1157, %v1161
    %v1163 = vld [vmem:[#allocation13] sm:$0xff]
    %v1164 = vld [vmem:[#allocation13 + $0x8] sm:$0xff]
    %v1165 = vld [vmem:[#allocation13 + $0x10] sm:$0xff]
    %v1166 = vld [vmem:[#allocation13 + $0x18] sm:$0xff]
    %v1167 = vld [vmem:[#allocation13 + $0x20] sm:$0xff]
    %v1168 = vld [vmem:[#allocation13 + $0x28] sm:$0xff]
    %v1169 = vld [vmem:[#allocation13 + $0x30] sm:$0xff]
    %v1170 = vld [vmem:[#allocation13 + $0x38] sm:$0xff]
    %v1171 = vld [vmem:[#allocation13 + $0x40] sm:$0xff]
    %v1172 = vld [vmem:[#allocation13 + $0x48] sm:$0xff]
    %v1173 = vld [vmem:[#allocation13 + $0x50] sm:$0xff]
    %v1174 = vld [vmem:[#allocation13 + $0x58] sm:$0xff]
    %v1175 = vld [vmem:[#allocation13 + $0x60] sm:$0xff]
    %v1176 = vld [vmem:[#allocation13 + $0x68] sm:$0xff]
    %v1177 = vld [vmem:[#allocation13 + $0x70] sm:$0xff]
    %v1178 = vld [vmem:[#allocation13 + $0x78] sm:$0xff]
    %v1179 = vld [vmem:[#allocation13 + $0x80] sm:$0xff]
    %v1180 = vld [vmem:[#allocation13 + $0x88] sm:$0xff]
    %v1181 = vld [vmem:[#allocation13 + $0x90] sm:$0xff]
    %v1182 = vld [vmem:[#allocation13 + $0x98] sm:$0xff]
    %v1183 = vld [vmem:[#allocation14] sm:$0x1f]
    %v1185 = vlaneseq
    %v1186 = vshrl.u32 %v1185, 7
    %v1187 = vsub.s32 0, %v1186
    %v1188 = vrot.slane %v1183, %v1187
    %v1189 = vlaneseq
    %v1190 = vshrl.u32 %v1189, 7
    %v1191 = vsub.s32 1, %v1190
    %v1192 = vrot.slane %v1183, %v1191
    %v1193 = vlaneseq
    %v1194 = vshrl.u32 %v1193, 7
    %v1195 = vsub.s32 2, %v1194
    %v1196 = vrot.slane %v1183, %v1195
    %v1197 = vlaneseq
    %v1198 = vshrl.u32 %v1197, 7
    %v1199 = vsub.s32 3, %v1198
    %v1200 = vrot.slane %v1183, %v1199
    %v1201 = vlaneseq
    %v1202 = vshrl.u32 %v1201, 7
    %v1203 = vsub.s32 4, %v1202
    %v1204 = vrot.slane %v1183, %v1203
    %v1211 = vsel %vm628, %v1162, 0
    %1213 = vmatprep.subr.mxu0 %v1164
    %1214 = vmatpush1.msra.mxu0 %v1163
    %1215 = vmatprep.subr.mxu0 %v1169
    %1216 = vmatpush1.msra.mxu0 %v1168
    %1217 = vmatprep.subr.mxu0 %v1174
    %1218 = vmatpush1.msra.mxu0 %v1173
    %1219 = vmatprep.subr.mxu0 %v1179
    %1220 = vmatpush1.msra.mxu0 %v1178
    %1221 = vmatprep.subr.mxu0 0.0
    %1222 = vmatpush1.msra.mxu0 0.0
    %1223 = vmatprep.subr.mxu0 0.0
    %1224 = vmatpush1.msra.mxu0 0.0
    %1225 = vmatprep.subr.mxu0 0.0
    %1226 = vmatpush1.msra.mxu0 0.0
    %1227 = vmatprep.subr.mxu0 0.0
    %1228 = vmatpush1.msra.mxu0 0.0
    %1229 = vmatprep.subr.mxu0 0.0
    %1230 = vmatpush1.msra.mxu0 0.0
    %1231 = vmatprep.subr.mxu0 0.0
    %1232 = vmatpush1.msra.mxu0 0.0
    %1233 = vmatprep.subr.mxu0 0.0
    %1234 = vmatpush1.msra.mxu0 0.0
    %1235 = vmatprep.subr.mxu0 0.0
    %1236 = vmatpush1.msra.mxu0 0.0
    %1237 = vmatprep.subr.mxu0 0.0
    %1238 = vmatpush1.msra.mxu0 0.0
    %1239 = vmatprep.subr.mxu0 0.0
    %1240 = vmatpush1.msra.mxu0 0.0
    %1241 = vmatprep.subr.mxu0 0.0
    %1242 = vmatpush1.msra.mxu0 0.0
    %1243 = vmatprep.subr.mxu0 0.0
    %1244 = vmatpush1.msra.mxu0 0.0
    %1245 = vmatprep.subr.mxu0 0.0
    %1246 = vmatpush1.msra.mxu0 0.0
    %1247 = vmatprep.subr.mxu0 0.0
    %1248 = vmatpush1.msra.mxu0 0.0
    %1249 = vmatprep.subr.mxu0 0.0
    %1250 = vmatpush1.msra.mxu0 0.0
    %1251 = vmatprep.subr.mxu0 0.0
    %1252 = vmatpush1.msra.mxu0 0.0
    %1253 = vmatprep.subr.mxu0 0.0
    %1254 = vmatpush1.msra.mxu0 0.0
    %1255 = vmatprep.subr.mxu0 0.0
    %1256 = vmatpush1.msra.mxu0 0.0
    %1257 = vmatprep.subr.mxu0 0.0
    %1258 = vmatpush1.msra.mxu0 0.0
    %1259 = vmatprep.subr.mxu0 0.0
    %1260 = vmatpush1.msra.mxu0 0.0
    %1261 = vmatprep.subr.mxu0 0.0
    %1262 = vmatpush1.msra.mxu0 0.0
    %1263 = vmatprep.subr.mxu0 0.0
    %1264 = vmatpush1.msra.mxu0 0.0
    %1265 = vmatprep.subr.mxu0 0.0
    %1266 = vmatpush1.msra.mxu0 0.0
    %1267 = vmatprep.subr.mxu0 0.0
    %1268 = vmatpush1.msra.mxu0 0.0
    %1269 = vmatprep.subr.mxu0 0.0
    %1270 = vmatpush1.msra.mxu0 0.0
    %1271 = vmatprep.subr.mxu0 0.0
    %1272 = vmatpush1.msra.mxu0 0.0
    %1273 = vmatprep.subr.mxu0 0.0
    %1274 = vmatpush1.msra.mxu0 0.0
    %1275 = vmatprep.subr.mxu0 0.0
    %1276 = vmatpush1.msra.mxu0 0.0
    %1277 = vmatprep.mubr.f32.mxu0 0.0
    %1278 = vmatmul.mubr.f32.gmra.mrb[0].mxu0 %v1211
    %v1279 = vpop.f32.mrb[0].mxu0
    %v1280 = vadd.f32 %v1188, %v1279
    %v1281 = vpop.f32.mrb[0].mxu0
    %v1282 = vadd.f32 %v1192, %v1281
    %1283 = vdwg.mxu0
    %1284 = vmatprep.subr.mxu0 %v1166
    %1285 = vmatpush1.msra.mxu0 %v1165
    %1286 = vmatprep.subr.mxu0 %v1171
    %1287 = vmatpush1.msra.mxu0 %v1170
    %1288 = vmatprep.subr.mxu0 %v1176
    %1289 = vmatpush1.msra.mxu0 %v1175
    %1290 = vmatprep.subr.mxu0 %v1181
    %1291 = vmatpush1.msra.mxu0 %v1180
    %1292 = vmatprep.subr.mxu0 0.0
    %1293 = vmatpush1.msra.mxu0 0.0
    %1294 = vmatprep.subr.mxu0 0.0
    %1295 = vmatpush1.msra.mxu0 0.0
    %1296 = vmatprep.subr.mxu0 0.0
    %1297 = vmatpush1.msra.mxu0 0.0
    %1298 = vmatprep.subr.mxu0 0.0
    %1299 = vmatpush1.msra.mxu0 0.0
    %1300 = vmatprep.subr.mxu0 0.0
    %1301 = vmatpush1.msra.mxu0 0.0
    %1302 = vmatprep.subr.mxu0 0.0
    %1303 = vmatpush1.msra.mxu0 0.0
    %1304 = vmatprep.subr.mxu0 0.0
    %1305 = vmatpush1.msra.mxu0 0.0
    %1306 = vmatprep.subr.mxu0 0.0
    %1307 = vmatpush1.msra.mxu0 0.0
    %1308 = vmatprep.subr.mxu0 0.0
    %1309 = vmatpush1.msra.mxu0 0.0
    %1310 = vmatprep.subr.mxu0 0.0
    %1311 = vmatpush1.msra.mxu0 0.0
    %1312 = vmatprep.subr.mxu0 0.0
    %1313 = vmatpush1.msra.mxu0 0.0
    %1314 = vmatprep.subr.mxu0 0.0
    %1315 = vmatpush1.msra.mxu0 0.0
    %1316 = vmatprep.subr.mxu0 0.0
    %1317 = vmatpush1.msra.mxu0 0.0
    %1318 = vmatprep.subr.mxu0 0.0
    %1319 = vmatpush1.msra.mxu0 0.0
    %1320 = vmatprep.subr.mxu0 0.0
    %1321 = vmatpush1.msra.mxu0 0.0
    %1322 = vmatprep.subr.mxu0 0.0
    %1323 = vmatpush1.msra.mxu0 0.0
    %1324 = vmatprep.subr.mxu0 0.0
    %1325 = vmatpush1.msra.mxu0 0.0
    %1326 = vmatprep.subr.mxu0 0.0
    %1327 = vmatpush1.msra.mxu0 0.0
    %1328 = vmatprep.subr.mxu0 0.0
    %1329 = vmatpush1.msra.mxu0 0.0
    %1330 = vmatprep.subr.mxu0 0.0
    %1331 = vmatpush1.msra.mxu0 0.0
    %1332 = vmatprep.subr.mxu0 0.0
    %1333 = vmatpush1.msra.mxu0 0.0
    %1334 = vmatprep.subr.mxu0 0.0
    %1335 = vmatpush1.msra.mxu0 0.0
    %1336 = vmatprep.subr.mxu0 0.0
    %1337 = vmatpush1.msra.mxu0 0.0
    %1338 = vmatprep.subr.mxu0 0.0
    %1339 = vmatpush1.msra.mxu0 0.0
    %1340 = vmatprep.subr.mxu0 0.0
    %1341 = vmatpush1.msra.mxu0 0.0
    %1342 = vmatprep.subr.mxu0 0.0
    %1343 = vmatpush1.msra.mxu0 0.0
    %1344 = vmatprep.subr.mxu0 0.0
    %1345 = vmatpush1.msra.mxu0 0.0
    %1346 = vmatprep.subr.mxu0 0.0
    %1347 = vmatpush1.msra.mxu0 0.0
    %1348 = vmatprep.mubr.f32.mxu0 0.0
    %1349 = vmatmul.mubr.f32.gmra.mrb[0].mxu0 %v1211
    %v1350 = vpop.f32.mrb[0].mxu0
    %v1351 = vadd.f32 %v1196, %v1350
    %v1352 = vpop.f32.mrb[0].mxu0
    %v1353 = vadd.f32 %v1200, %v1352
    %1354 = vdwg.mxu0
    %1355 = vmatprep.subr.mxu0 0.0
    %1356 = vmatpush1.msra.mxu0 %v1167
    %1357 = vmatprep.subr.mxu0 0.0
    %1358 = vmatpush1.msra.mxu0 %v1172
    %1359 = vmatprep.subr.mxu0 0.0
    %1360 = vmatpush1.msra.mxu0 %v1177
    %1361 = vmatprep.subr.mxu0 0.0
    %1362 = vmatpush1.msra.mxu0 %v1182
    %1363 = vmatprep.subr.mxu0 0.0
    %1364 = vmatpush1.msra.mxu0 0.0
    %1365 = vmatprep.subr.mxu0 0.0
    %1366 = vmatpush1.msra.mxu0 0.0
    %1367 = vmatprep.subr.mxu0 0.0
    %1368 = vmatpush1.msra.mxu0 0.0
    %1369 = vmatprep.subr.mxu0 0.0
    %1370 = vmatpush1.msra.mxu0 0.0
    %1371 = vmatprep.subr.mxu0 0.0
    %1372 = vmatpush1.msra.mxu0 0.0
    %1373 = vmatprep.subr.mxu0 0.0
    %1374 = vmatpush1.msra.mxu0 0.0
    %1375 = vmatprep.subr.mxu0 0.0
    %1376 = vmatpush1.msra.mxu0 0.0
    %1377 = vmatprep.subr.mxu0 0.0
    %1378 = vmatpush1.msra.mxu0 0.0
    %1379 = vmatprep.subr.mxu0 0.0
    %1380 = vmatpush1.msra.mxu0 0.0
    %1381 = vmatprep.subr.mxu0 0.0
    %1382 = vmatpush1.msra.mxu0 0.0
    %1383 = vmatprep.subr.mxu0 0.0
    %1384 = vmatpush1.msra.mxu0 0.0
    %1385 = vmatprep.subr.mxu0 0.0
    %1386 = vmatpush1.msra.mxu0 0.0
    %1387 = vmatprep.subr.mxu0 0.0
    %1388 = vmatpush1.msra.mxu0 0.0
    %1389 = vmatprep.subr.mxu0 0.0
    %1390 = vmatpush1.msra.mxu0 0.0
    %1391 = vmatprep.subr.mxu0 0.0
    %1392 = vmatpush1.msra.mxu0 0.0
    %1393 = vmatprep.subr.mxu0 0.0
    %1394 = vmatpush1.msra.mxu0 0.0
    %1395 = vmatprep.subr.mxu0 0.0
    %1396 = vmatpush1.msra.mxu0 0.0
    %1397 = vmatprep.subr.mxu0 0.0
    %1398 = vmatpush1.msra.mxu0 0.0
    %1399 = vmatprep.subr.mxu0 0.0
    %1400 = vmatpush1.msra.mxu0 0.0
    %1401 = vmatprep.subr.mxu0 0.0
    %1402 = vmatpush1.msra.mxu0 0.0
    %1403 = vmatprep.subr.mxu0 0.0
    %1404 = vmatpush1.msra.mxu0 0.0
    %1405 = vmatprep.subr.mxu0 0.0
    %1406 = vmatpush1.msra.mxu0 0.0
    %1407 = vmatprep.subr.mxu0 0.0
    %1408 = vmatpush1.msra.mxu0 0.0
    %1409 = vmatprep.subr.mxu0 0.0
    %1410 = vmatpush1.msra.mxu0 0.0
    %1411 = vmatprep.subr.mxu0 0.0
    %1412 = vmatpush1.msra.mxu0 0.0
    %1413 = vmatprep.subr.mxu0 0.0
    %1414 = vmatpush1.msra.mxu0 0.0
    %1415 = vmatprep.subr.mxu0 0.0
    %1416 = vmatpush1.msra.mxu0 0.0
    %1417 = vmatprep.subr.mxu0 0.0
    %1418 = vmatpush1.msra.mxu0 0.0
    %1419 = vmatprep.mubr.f32.mxu0 0.0
    %1420 = vmatmul.mubr.f32.gmra.mrb[0].mxu0 %v1211
    %v1421 = vpop.f32.mrb[0].mxu0
    %v1422 = vadd.f32 %v1204, %v1421
    %v1423 = vpop.f32.mrb[0].mxu0
    %1424 = vdwg.mxu0
    %vm1425 = vcmp.gt.f32.partialorder %v1280, 0.0
    %vm1426 = vcmp.gt.f32.partialorder %v1282, 0.0
    %vm1427 = vcmp.gt.f32.partialorder %v1351, 0.0
    %vm1428 = vcmp.gt.f32.partialorder %v1353, 0.0
    %vm1429 = vcmp.gt.f32.partialorder %v1422, 0.0
    %v1430 = vmul.f32 %v1280, 0.01
    %v1431 = vmul.f32 %v1282, 0.01
    %v1432 = vmul.f32 %v1351, 0.01
    %v1433 = vmul.f32 %v1353, 0.01
    %v1434 = vmul.f32 %v1422, 0.01
    %v1435 = vsel %vm1425, %v1280, %v1430
    %v1436 = vsel %vm1426, %v1282, %v1431
    %v1437 = vsel %vm1427, %v1351, %v1432
    %v1438 = vsel %vm1428, %v1353, %v1433
    %v1439 = vsel %vm1429, %v1422, %v1434
    %v1440 = vadd.f32 %v1066, %v1435
    %v1441 = vadd.f32 %v1067, %v1436
    %v1442 = vadd.f32 %v1068, %v1437
    %v1443 = vadd.f32 %v1069, %v1438
    %v1444 = vadd.f32 %v1070, %v1439
    %v1445 = vld [vmem:[%s9] sm:$0xff]
    %v1446 = vld [vmem:[%s9 + $0x8] sm:$0x1]
    %v1447 = vld [vmem:[#allocation16] sm:$0x1]
    %v1449 = vlaneseq
    %v1450 = vshrl.u32 %v1449, 7
    %v1451 = vsub.s32 0, %v1450
    %v1452 = vrot.slane %v1447, %v1451
    %1455 = vrot.lane.b32.xlu0 %v1440, 98
    %v1456 = vpop.permute.xlu0 %1455
    %vm1457 = vcmask 72704
    %v1458 = vsel %vm1457, %v1456, 0
    %vm1460 = vcmask 1040384
    %v1462 = vsel %vm1460, %v1446, 0
    %1464 = vmatprep.subr.mxu0 0.0
    %1465 = vmatpush1.msra.mxu0 %v1445
    %1466 = vmatprep.subr.mxu0 0.0
    %1467 = vmatpush1.msra.mxu0 %v1462
    %1468 = vmatprep.subr.mxu0 0.0
    %1469 = vmatpush1.msra.mxu0 0.0
    %1470 = vmatprep.subr.mxu0 0.0
    %1471 = vmatpush1.msra.mxu0 0.0
    %1472 = vmatprep.subr.mxu0 0.0
    %1473 = vmatpush1.msra.mxu0 0.0
    %1474 = vmatprep.subr.mxu0 0.0
    %1475 = vmatpush1.msra.mxu0 0.0
    %1476 = vmatprep.subr.mxu0 0.0
    %1477 = vmatpush1.msra.mxu0 0.0
    %1478 = vmatprep.subr.mxu0 0.0
    %1479 = vmatpush1.msra.mxu0 0.0
    %1480 = vmatprep.subr.mxu0 0.0
    %1481 = vmatpush1.msra.mxu0 0.0
    %1482 = vmatprep.subr.mxu0 0.0
    %1483 = vmatpush1.msra.mxu0 0.0
    %1484 = vmatprep.subr.mxu0 0.0
    %1485 = vmatpush1.msra.mxu0 0.0
    %1486 = vmatprep.subr.mxu0 0.0
    %1487 = vmatpush1.msra.mxu0 0.0
    %1488 = vmatprep.subr.mxu0 0.0
    %1489 = vmatpush1.msra.mxu0 0.0
    %1490 = vmatprep.subr.mxu0 0.0
    %1491 = vmatpush1.msra.mxu0 0.0
    %1492 = vmatprep.subr.mxu0 0.0
    %1493 = vmatpush1.msra.mxu0 0.0
    %1494 = vmatprep.subr.mxu0 0.0
    %1495 = vmatpush1.msra.mxu0 0.0
    %1496 = vmatprep.subr.mxu0 0.0
    %1497 = vmatpush1.msra.mxu0 0.0
    %1498 = vmatprep.subr.mxu0 0.0
    %1499 = vmatpush1.msra.mxu0 0.0
    %1500 = vmatprep.subr.mxu0 0.0
    %1501 = vmatpush1.msra.mxu0 0.0
    %1502 = vmatprep.subr.mxu0 0.0
    %1503 = vmatpush1.msra.mxu0 0.0
    %1504 = vmatprep.subr.mxu0 0.0
    %1505 = vmatpush1.msra.mxu0 0.0
    %1506 = vmatprep.subr.mxu0 0.0
    %1507 = vmatpush1.msra.mxu0 0.0
    %1508 = vmatprep.subr.mxu0 0.0
    %1509 = vmatpush1.msra.mxu0 0.0
    %1510 = vmatprep.subr.mxu0 0.0
    %1511 = vmatpush1.msra.mxu0 0.0
    %1512 = vmatprep.subr.mxu0 0.0
    %1513 = vmatpush1.msra.mxu0 0.0
    %1514 = vmatprep.subr.mxu0 0.0
    %1515 = vmatpush1.msra.mxu0 0.0
    %1516 = vmatprep.subr.mxu0 0.0
    %1517 = vmatpush1.msra.mxu0 0.0
    %1518 = vmatprep.subr.mxu0 0.0
    %1519 = vmatpush1.msra.mxu0 0.0
    %1520 = vmatprep.subr.mxu0 0.0
    %1521 = vmatpush1.msra.mxu0 0.0
    %1522 = vmatprep.subr.mxu0 0.0
    %1523 = vmatpush1.msra.mxu0 0.0
    %1524 = vmatprep.subr.mxu0 0.0
    %1525 = vmatpush1.msra.mxu0 0.0
    %1526 = vmatprep.subr.mxu0 0.0
    %1527 = vmatpush1.msra.mxu0 0.0
    %1528 = vmatprep.mubr.f32.mxu0 0.0
    %1529 = vmatmul.mubr.f32.gmra.mrb[0].mxu0 %v1458
    %v1530 = vpop.f32.mrb[0].mxu0
    %v1531 = vadd.f32 %v1452, %v1530
    %v1532 = vpop.f32.mrb[0].mxu0
    %1533 = vdwg.mxu0
    %vm1534 = vcmp.gt.f32.partialorder %v1531, 0.0
    %v1535 = vmul.f32 %v1531, 0.01
    %v1536 = vsel %vm1534, %v1531, %v1535
    %v1537 = vld [vmem:[#allocation17] sm:$0xff]
    %v1538 = vld [vmem:[#allocation17 + $0x8] sm:$0xff]
    %v1539 = vld [vmem:[#allocation17 + $0x10] sm:$0xff]
    %v1540 = vld [vmem:[#allocation17 + $0x18] sm:$0xff]
    %v1541 = vld [vmem:[#allocation17 + $0x20] sm:$0xff]
    %v1542 = vld [vmem:[#allocation17 + $0x28] sm:$0xff]
    %v1543 = vld [vmem:[#allocation17 + $0x30] sm:$0xff]
    %v1544 = vld [vmem:[#allocation17 + $0x38] sm:$0xff]
    %v1545 = vld [vmem:[#allocation17 + $0x40] sm:$0xff]
    %v1546 = vld [vmem:[#allocation17 + $0x48] sm:$0xff]
    %v1547 = vld [vmem:[#allocation17 + $0x50] sm:$0xff]
    %v1548 = vld [vmem:[#allocation17 + $0x58] sm:$0xff]
    %v1549 = vld [vmem:[#allocation17 + $0x60] sm:$0xff]
    %v1550 = vld [vmem:[#allocation17 + $0x68] sm:$0xff]
    %v1551 = vld [vmem:[#allocation17 + $0x70] sm:$0xff]
    %v1552 = vld [vmem:[#allocation17 + $0x78] sm:$0xff]
    %v1553 = vld [vmem:[#allocation17 + $0x80] sm:$0xff]
    %v1554 = vld [vmem:[#allocation17 + $0x88] sm:$0xff]
    %v1555 = vld [vmem:[#allocation17 + $0x90] sm:$0xff]
    %v1556 = vld [vmem:[#allocation17 + $0x98] sm:$0xff]
    %v1557 = vld [vmem:[%s12] sm:$0x1f]
    %v1559 = vlaneseq
    %v1560 = vshrl.u32 %v1559, 7
    %v1561 = vsub.s32 0, %v1560
    %v1562 = vrot.slane %v1557, %v1561
    %v1563 = vlaneseq
    %v1564 = vshrl.u32 %v1563, 7
    %v1565 = vsub.s32 1, %v1564
    %v1566 = vrot.slane %v1557, %v1565
    %v1567 = vlaneseq
    %v1568 = vshrl.u32 %v1567, 7
    %v1569 = vsub.s32 2, %v1568
    %v1570 = vrot.slane %v1557, %v1569
    %v1571 = vlaneseq
    %v1572 = vshrl.u32 %v1571, 7
    %v1573 = vsub.s32 3, %v1572
    %v1574 = vrot.slane %v1557, %v1573
    %v1575 = vlaneseq
    %v1576 = vshrl.u32 %v1575, 7
    %v1577 = vsub.s32 4, %v1576
    %v1578 = vrot.slane %v1557, %v1577
    %v1585 = vsel %vm628, %v1536, 0
    %1587 = vmatprep.subr.mxu0 %v1538
    %1588 = vmatpush1.msra.mxu0 %v1537
    %1589 = vmatprep.subr.mxu0 %v1543
    %1590 = vmatpush1.msra.mxu0 %v1542
    %1591 = vmatprep.subr.mxu0 %v1548
    %1592 = vmatpush1.msra.mxu0 %v1547
    %1593 = vmatprep.subr.mxu0 %v1553
    %1594 = vmatpush1.msra.mxu0 %v1552
    %1595 = vmatprep.subr.mxu0 0.0
    %1596 = vmatpush1.msra.mxu0 0.0
    %1597 = vmatprep.subr.mxu0 0.0
    %1598 = vmatpush1.msra.mxu0 0.0
    %1599 = vmatprep.subr.mxu0 0.0
    %1600 = vmatpush1.msra.mxu0 0.0
    %1601 = vmatprep.subr.mxu0 0.0
    %1602 = vmatpush1.msra.mxu0 0.0
    %1603 = vmatprep.subr.mxu0 0.0
    %1604 = vmatpush1.msra.mxu0 0.0
    %1605 = vmatprep.subr.mxu0 0.0
    %1606 = vmatpush1.msra.mxu0 0.0
    %1607 = vmatprep.subr.mxu0 0.0
    %1608 = vmatpush1.msra.mxu0 0.0
    %1609 = vmatprep.subr.mxu0 0.0
    %1610 = vmatpush1.msra.mxu0 0.0
    %1611 = vmatprep.subr.mxu0 0.0
    %1612 = vmatpush1.msra.mxu0 0.0
    %1613 = vmatprep.subr.mxu0 0.0
    %1614 = vmatpush1.msra.mxu0 0.0
    %1615 = vmatprep.subr.mxu0 0.0
    %1616 = vmatpush1.msra.mxu0 0.0
    %1617 = vmatprep.subr.mxu0 0.0
    %1618 = vmatpush1.msra.mxu0 0.0
    %1619 = vmatprep.subr.mxu0 0.0
    %1620 = vmatpush1.msra.mxu0 0.0
    %1621 = vmatprep.subr.mxu0 0.0
    %1622 = vmatpush1.msra.mxu0 0.0
    %1623 = vmatprep.subr.mxu0 0.0
    %1624 = vmatpush1.msra.mxu0 0.0
    %1625 = vmatprep.subr.mxu0 0.0
    %1626 = vmatpush1.msra.mxu0 0.0
    %1627 = vmatprep.subr.mxu0 0.0
    %1628 = vmatpush1.msra.mxu0 0.0
    %1629 = vmatprep.subr.mxu0 0.0
    %1630 = vmatpush1.msra.mxu0 0.0
    %1631 = vmatprep.subr.mxu0 0.0
    %1632 = vmatpush1.msra.mxu0 0.0
    %1633 = vmatprep.subr.mxu0 0.0
    %1634 = vmatpush1.msra.mxu0 0.0
    %1635 = vmatprep.subr.mxu0 0.0
    %1636 = vmatpush1.msra.mxu0 0.0
    %1637 = vmatprep.subr.mxu0 0.0
    %1638 = vmatpush1.msra.mxu0 0.0
    %1639 = vmatprep.subr.mxu0 0.0
    %1640 = vmatpush1.msra.mxu0 0.0
    %1641 = vmatprep.subr.mxu0 0.0
    %1642 = vmatpush1.msra.mxu0 0.0
    %1643 = vmatprep.subr.mxu0 0.0
    %1644 = vmatpush1.msra.mxu0 0.0
    %1645 = vmatprep.subr.mxu0 0.0
    %1646 = vmatpush1.msra.mxu0 0.0
    %1647 = vmatprep.subr.mxu0 0.0
    %1648 = vmatpush1.msra.mxu0 0.0
    %1649 = vmatprep.subr.mxu0 0.0
    %1650 = vmatpush1.msra.mxu0 0.0
    %1651 = vmatprep.mubr.f32.mxu0 0.0
    %1652 = vmatmul.mubr.f32.gmra.mrb[0].mxu0 %v1585
    %v1653 = vpop.f32.mrb[0].mxu0
    %v1654 = vadd.f32 %v1562, %v1653
    %v1655 = vpop.f32.mrb[0].mxu0
    %v1656 = vadd.f32 %v1566, %v1655
    %1657 = vdwg.mxu0
    %1658 = vmatprep.subr.mxu0 %v1540
    %1659 = vmatpush1.msra.mxu0 %v1539
    %1660 = vmatprep.subr.mxu0 %v1545
    %1661 = vmatpush1.msra.mxu0 %v1544
    %1662 = vmatprep.subr.mxu0 %v1550
    %1663 = vmatpush1.msra.mxu0 %v1549
    %1664 = vmatprep.subr.mxu0 %v1555
    %1665 = vmatpush1.msra.mxu0 %v1554
    %1666 = vmatprep.subr.mxu0 0.0
    %1667 = vmatpush1.msra.mxu0 0.0
    %1668 = vmatprep.subr.mxu0 0.0
    %1669 = vmatpush1.msra.mxu0 0.0
    %1670 = vmatprep.subr.mxu0 0.0
    %1671 = vmatpush1.msra.mxu0 0.0
    %1672 = vmatprep.subr.mxu0 0.0
    %1673 = vmatpush1.msra.mxu0 0.0
    %1674 = vmatprep.subr.mxu0 0.0
    %1675 = vmatpush1.msra.mxu0 0.0
    %1676 = vmatprep.subr.mxu0 0.0
    %1677 = vmatpush1.msra.mxu0 0.0
    %1678 = vmatprep.subr.mxu0 0.0
    %1679 = vmatpush1.msra.mxu0 0.0
    %1680 = vmatprep.subr.mxu0 0.0
    %1681 = vmatpush1.msra.mxu0 0.0
    %1682 = vmatprep.subr.mxu0 0.0
    %1683 = vmatpush1.msra.mxu0 0.0
    %1684 = vmatprep.subr.mxu0 0.0
    %1685 = vmatpush1.msra.mxu0 0.0
    %1686 = vmatprep.subr.mxu0 0.0
    %1687 = vmatpush1.msra.mxu0 0.0
    %1688 = vmatprep.subr.mxu0 0.0
    %1689 = vmatpush1.msra.mxu0 0.0
    %1690 = vmatprep.subr.mxu0 0.0
    %1691 = vmatpush1.msra.mxu0 0.0
    %1692 = vmatprep.subr.mxu0 0.0
    %1693 = vmatpush1.msra.mxu0 0.0
    %1694 = vmatprep.subr.mxu0 0.0
    %1695 = vmatpush1.msra.mxu0 0.0
    %1696 = vmatprep.subr.mxu0 0.0
    %1697 = vmatpush1.msra.mxu0 0.0
    %1698 = vmatprep.subr.mxu0 0.0
    %1699 = vmatpush1.msra.mxu0 0.0
    %1700 = vmatprep.subr.mxu0 0.0
    %1701 = vmatpush1.msra.mxu0 0.0
    %1702 = vmatprep.subr.mxu0 0.0
    %1703 = vmatpush1.msra.mxu0 0.0
    %1704 = vmatprep.subr.mxu0 0.0
    %1705 = vmatpush1.msra.mxu0 0.0
    %1706 = vmatprep.subr.mxu0 0.0
    %1707 = vmatpush1.msra.mxu0 0.0
    %1708 = vmatprep.subr.mxu0 0.0
    %1709 = vmatpush1.msra.mxu0 0.0
    %1710 = vmatprep.subr.mxu0 0.0
    %1711 = vmatpush1.msra.mxu0 0.0
    %1712 = vmatprep.subr.mxu0 0.0
    %1713 = vmatpush1.msra.mxu0 0.0
    %1714 = vmatprep.subr.mxu0 0.0
    %1715 = vmatpush1.msra.mxu0 0.0
    %1716 = vmatprep.subr.mxu0 0.0
    %1717 = vmatpush1.msra.mxu0 0.0
    %1718 = vmatprep.subr.mxu0 0.0
    %1719 = vmatpush1.msra.mxu0 0.0
    %1720 = vmatprep.subr.mxu0 0.0
    %1721 = vmatpush1.msra.mxu0 0.0
    %1722 = vmatprep.mubr.f32.mxu0 0.0
    %1723 = vmatmul.mubr.f32.gmra.mrb[0].mxu0 %v1585
    %v1724 = vpop.f32.mrb[0].mxu0
    %v1725 = vadd.f32 %v1570, %v1724
    %v1726 = vpop.f32.mrb[0].mxu0
    %v1727 = vadd.f32 %v1574, %v1726
    %1728 = vdwg.mxu0
    %1729 = vmatprep.subr.mxu0 0.0
    %1730 = vmatpush1.msra.mxu0 %v1541
    %1731 = vmatprep.subr.mxu0 0.0
    %1732 = vmatpush1.msra.mxu0 %v1546
    %1733 = vmatprep.subr.mxu0 0.0
    %1734 = vmatpush1.msra.mxu0 %v1551
    %1735 = vmatprep.subr.mxu0 0.0
    %1736 = vmatpush1.msra.mxu0 %v1556
    %1737 = vmatprep.subr.mxu0 0.0
    %1738 = vmatpush1.msra.mxu0 0.0
    %1739 = vmatprep.subr.mxu0 0.0
    %1740 = vmatpush1.msra.mxu0 0.0
    %1741 = vmatprep.subr.mxu0 0.0
    %1742 = vmatpush1.msra.mxu0 0.0
    %1743 = vmatprep.subr.mxu0 0.0
    %1744 = vmatpush1.msra.mxu0 0.0
    %1745 = vmatprep.subr.mxu0 0.0
    %1746 = vmatpush1.msra.mxu0 0.0
    %1747 = vmatprep.subr.mxu0 0.0
    %1748 = vmatpush1.msra.mxu0 0.0
    %1749 = vmatprep.subr.mxu0 0.0
    %1750 = vmatpush1.msra.mxu0 0.0
    %1751 = vmatprep.subr.mxu0 0.0
    %1752 = vmatpush1.msra.mxu0 0.0
    %1753 = vmatprep.subr.mxu0 0.0
    %1754 = vmatpush1.msra.mxu0 0.0
    %1755 = vmatprep.subr.mxu0 0.0
    %1756 = vmatpush1.msra.mxu0 0.0
    %1757 = vmatprep.subr.mxu0 0.0
    %1758 = vmatpush1.msra.mxu0 0.0
    %1759 = vmatprep.subr.mxu0 0.0
    %1760 = vmatpush1.msra.mxu0 0.0
    %1761 = vmatprep.subr.mxu0 0.0
    %1762 = vmatpush1.msra.mxu0 0.0
    %1763 = vmatprep.subr.mxu0 0.0
    %1764 = vmatpush1.msra.mxu0 0.0
    %1765 = vmatprep.subr.mxu0 0.0
    %1766 = vmatpush1.msra.mxu0 0.0
    %1767 = vmatprep.subr.mxu0 0.0
    %1768 = vmatpush1.msra.mxu0 0.0
    %1769 = vmatprep.subr.mxu0 0.0
    %1770 = vmatpush1.msra.mxu0 0.0
    %1771 = vmatprep.subr.mxu0 0.0
    %1772 = vmatpush1.msra.mxu0 0.0
    %1773 = vmatprep.subr.mxu0 0.0
    %1774 = vmatpush1.msra.mxu0 0.0
    %1775 = vmatprep.subr.mxu0 0.0
    %1776 = vmatpush1.msra.mxu0 0.0
    %1777 = vmatprep.subr.mxu0 0.0
    %1778 = vmatpush1.msra.mxu0 0.0
    %1779 = vmatprep.subr.mxu0 0.0
    %1780 = vmatpush1.msra.mxu0 0.0
    %1781 = vmatprep.subr.mxu0 0.0
    %1782 = vmatpush1.msra.mxu0 0.0
    %1783 = vmatprep.subr.mxu0 0.0
    %1784 = vmatpush1.msra.mxu0 0.0
    %1785 = vmatprep.subr.mxu0 0.0
    %1786 = vmatpush1.msra.mxu0 0.0
    %1787 = vmatprep.subr.mxu0 0.0
    %1788 = vmatpush1.msra.mxu0 0.0
    %1789 = vmatprep.subr.mxu0 0.0
    %1790 = vmatpush1.msra.mxu0 0.0
    %1791 = vmatprep.subr.mxu0 0.0
    %1792 = vmatpush1.msra.mxu0 0.0
    %1793 = vmatprep.mubr.f32.mxu0 0.0
    %1794 = vmatmul.mubr.f32.gmra.mrb[0].mxu0 %v1585
    %v1795 = vpop.f32.mrb[0].mxu0
    %v1796 = vadd.f32 %v1578, %v1795
    %v1797 = vpop.f32.mrb[0].mxu0
    %1798 = vdwg.mxu0
    %vm1799 = vcmp.gt.f32.partialorder %v1654, 0.0
    %vm1800 = vcmp.gt.f32.partialorder %v1656, 0.0
    %vm1801 = vcmp.gt.f32.partialorder %v1725, 0.0
    %vm1802 = vcmp.gt.f32.partialorder %v1727, 0.0
    %vm1803 = vcmp.gt.f32.partialorder %v1796, 0.0
    %v1804 = vmul.f32 %v1654, 0.01
    %v1805 = vmul.f32 %v1656, 0.01
    %v1806 = vmul.f32 %v1725, 0.01
    %v1807 = vmul.f32 %v1727, 0.01
    %v1808 = vmul.f32 %v1796, 0.01
    %v1809 = vsel %vm1799, %v1654, %v1804
    %v1810 = vsel %vm1800, %v1656, %v1805
    %v1811 = vsel %vm1801, %v1725, %v1806
    %v1812 = vsel %vm1802, %v1727, %v1807
    %v1813 = vsel %vm1803, %v1796, %v1808
    %v1814 = vadd.f32 %v1440, %v1809
    %v1815 = vadd.f32 %v1441, %v1810
    %v1816 = vadd.f32 %v1442, %v1811
    %v1817 = vadd.f32 %v1443, %v1812
    %v1818 = vadd.f32 %v1444, %v1813
    %v1819 = vld [vmem:[#allocation19] sm:$0xff]
    %v1820 = vld [vmem:[#allocation19 + $0x8] sm:$0xff]
    %v1821 = vld [vmem:[#allocation19 + $0x10] sm:$0xff]
    %v1822 = vld [vmem:[#allocation19 + $0x18] sm:$0xff]
    %v1823 = vld [vmem:[#allocation19 + $0x20] sm:$0xff]
    %v1824 = vld [vmem:[#allocation19 + $0x28] sm:$0xff]
    %v1825 = vld [vmem:[#allocation19 + $0x30] sm:$0xff]
    %v1826 = vld [vmem:[#allocation19 + $0x38] sm:$0xff]
    %v1827 = vld [vmem:[#allocation19 + $0x40] sm:$0xff]
    %v1828 = vld [vmem:[#allocation19 + $0x48] sm:$0xff]
    %v1829 = vld [vmem:[#allocation19 + $0x50] sm:$0xff]
    %v1830 = vld [vmem:[#allocation19 + $0x58] sm:$0xff]
    %v1831 = vld [vmem:[#allocation19 + $0x60] sm:$0xff]
    %v1832 = vld [vmem:[#allocation19 + $0x68] sm:$0xff]
    %v1833 = vld [vmem:[#allocation19 + $0x70] sm:$0xff]
    %v1834 = vld [vmem:[#allocation19 + $0x78] sm:$0xff]
    %v1835 = vld [vmem:[#allocation19 + $0x80] sm:$0xff]
    %v1836 = vld [vmem:[#allocation19 + $0x88] sm:$0xff]
    %v1837 = vld [vmem:[#allocation19 + $0x90] sm:$0xff]
    %v1838 = vld [vmem:[#allocation19 + $0x98] sm:$0xff]
    %v1839 = vld [vmem:[#allocation19 + $0xa0] sm:$0xff]
    %v1840 = vld [vmem:[#allocation19 + $0xa8] sm:$0xff]
    %v1841 = vld [vmem:[#allocation19 + $0xb0] sm:$0xff]
    %v1842 = vld [vmem:[#allocation19 + $0xb8] sm:$0xff]
    %v1843 = vld [vmem:[#allocation19 + $0xc0] sm:$0xff]
    %v1844 = vld [vmem:[#allocation19 + $0xc8] sm:$0xff]
    %v1845 = vld [vmem:[#allocation19 + $0xd0] sm:$0xff]
    %v1846 = vld [vmem:[#allocation19 + $0xd8] sm:$0xff]
    %v1847 = vld [vmem:[#allocation19 + $0xe0] sm:$0xff]
    %v1848 = vld [vmem:[#allocation19 + $0xe8] sm:$0xff]
    %v1849 = vld [vmem:[#allocation19 + $0xf0] sm:$0xff]
    %v1850 = vld [vmem:[#allocation19 + $0xf8] sm:$0xff]
    %v1851 = vld [vmem:[#allocation19 + $0x100] sm:$0xff]
    %v1852 = vld [vmem:[#allocation19 + $0x108] sm:$0xff]
    %v1853 = vld [vmem:[#allocation19 + $0x110] sm:$0xff]
    %v1854 = vld [vmem:[#allocation19 + $0x118] sm:$0xff]
    %v1855 = vld [vmem:[#allocation19 + $0x120] sm:$0xff]
    %v1856 = vld [vmem:[#allocation19 + $0x128] sm:$0xff]
    %v1857 = vld [vmem:[#allocation19 + $0x130] sm:$0xff]
    %v1858 = vld [vmem:[#allocation19 + $0x138] sm:$0xff]
    %v1859 = vld [vmem:[#allocation19 + $0x140] sm:$0xff]
    %v1860 = vld [vmem:[#allocation19 + $0x148] sm:$0xff]
    %v1861 = vld [vmem:[#allocation19 + $0x150] sm:$0xff]
    %v1862 = vld [vmem:[#allocation19 + $0x158] sm:$0xff]
    %v1863 = vld [vmem:[#allocation19 + $0x160] sm:$0xff]
    %v1864 = vld [vmem:[#allocation19 + $0x168] sm:$0xff]
    %v1865 = vld [vmem:[#allocation19 + $0x170] sm:$0xff]
    %v1866 = vld [vmem:[#allocation19 + $0x178] sm:$0xff]
    %v1867 = vld [vmem:[#allocation19 + $0x180] sm:$0xff]
    %v1868 = vld [vmem:[#allocation19 + $0x188] sm:$0xff]
    %v1869 = vld [vmem:[#allocation19 + $0x190] sm:$0xff]
    %v1870 = vld [vmem:[#allocation19 + $0x198] sm:$0xff]
    %v1871 = vld [vmem:[#allocation19 + $0x1a0] sm:$0xff]
    %v1872 = vld [vmem:[#allocation19 + $0x1a8] sm:$0xff]
    %v1873 = vld [vmem:[#allocation19 + $0x1b0] sm:$0xff]
    %v1874 = vld [vmem:[#allocation19 + $0x1b8] sm:$0xff]
    %v1875 = vld [vmem:[#allocation19 + $0x1c0] sm:$0xff]
    %v1876 = vld [vmem:[#allocation19 + $0x1c8] sm:$0xff]
    %v1877 = vld [vmem:[#allocation19 + $0x1d0] sm:$0xff]
    %v1878 = vld [vmem:[#allocation19 + $0x1d8] sm:$0xff]
    %v1879 = vld [vmem:[#allocation19 + $0x1e0] sm:$0xff]
    %v1880 = vld [vmem:[#allocation19 + $0x1e8] sm:$0xff]
    %v1881 = vld [vmem:[#allocation19 + $0x1f0] sm:$0xff]
    %v1882 = vld [vmem:[#allocation19 + $0x1f8] sm:$0xff]
    %v1883 = vld [vmem:[#allocation19 + $0x200] sm:$0xff]
    %v1884 = vld [vmem:[#allocation19 + $0x208] sm:$0xff]
    %v1885 = vld [vmem:[#allocation19 + $0x210] sm:$0xff]
    %v1886 = vld [vmem:[#allocation19 + $0x218] sm:$0xff]
    %v1887 = vld [vmem:[#allocation19 + $0x220] sm:$0xff]
    %v1888 = vld [vmem:[#allocation19 + $0x228] sm:$0xff]
    %v1889 = vld [vmem:[#allocation19 + $0x230] sm:$0xff]
    %v1890 = vld [vmem:[#allocation19 + $0x238] sm:$0xff]
    %v1891 = vld [vmem:[%s14] sm:$0x1]
    %v1893 = vlaneseq
    %v1894 = vshrl.u32 %v1893, 7
    %v1895 = vsub.s32 0, %v1894
    %v1896 = vrot.slane %v1891, %v1895
    %vm1898 = vcmask 523264
    %v1900 = vsel %vm1898, %v1818, 0
    %1902 = vmatprep.subr.mxu0 0.0
    %1903 = vmatpush1.msra.mxu0 %v1819
    %1904 = vmatprep.subr.mxu0 0.0
    %1905 = vmatpush1.msra.mxu0 %v1820
    %1906 = vmatprep.subr.mxu0 0.0
    %1907 = vmatpush1.msra.mxu0 %v1821
    %1908 = vmatprep.subr.mxu0 0.0
    %1909 = vmatpush1.msra.mxu0 %v1822
    %1910 = vmatprep.subr.mxu0 0.0
    %1911 = vmatpush1.msra.mxu0 %v1823
    %1912 = vmatprep.subr.mxu0 0.0
    %1913 = vmatpush1.msra.mxu0 %v1824
    %1914 = vmatprep.subr.mxu0 0.0
    %1915 = vmatpush1.msra.mxu0 %v1825
    %1916 = vmatprep.subr.mxu0 0.0
    %1917 = vmatpush1.msra.mxu0 %v1826
    %1918 = vmatprep.subr.mxu0 0.0
    %1919 = vmatpush1.msra.mxu0 %v1827
    %1920 = vmatprep.subr.mxu0 0.0
    %1921 = vmatpush1.msra.mxu0 %v1828
    %1922 = vmatprep.subr.mxu0 0.0
    %1923 = vmatpush1.msra.mxu0 %v1829
    %1924 = vmatprep.subr.mxu0 0.0
    %1925 = vmatpush1.msra.mxu0 %v1830
    %1926 = vmatprep.subr.mxu0 0.0
    %1927 = vmatpush1.msra.mxu0 %v1831
    %1928 = vmatprep.subr.mxu0 0.0
    %1929 = vmatpush1.msra.mxu0 %v1832
    %1930 = vmatprep.subr.mxu0 0.0
    %1931 = vmatpush1.msra.mxu0 %v1833
    %1932 = vmatprep.subr.mxu0 0.0
    %1933 = vmatpush1.msra.mxu0 %v1834
    %1934 = vmatprep.subr.mxu0 0.0
    %1935 = vmatpush1.msra.mxu0 %v1835
    %1936 = vmatprep.subr.mxu0 0.0
    %1937 = vmatpush1.msra.mxu0 %v1836
    %1938 = vmatprep.subr.mxu0 0.0
    %1939 = vmatpush1.msra.mxu0 %v1837
    %1940 = vmatprep.subr.mxu0 0.0
    %1941 = vmatpush1.msra.mxu0 %v1838
    %1942 = vmatprep.subr.mxu0 0.0
    %1943 = vmatpush1.msra.mxu0 %v1839
    %1944 = vmatprep.subr.mxu0 0.0
    %1945 = vmatpush1.msra.mxu0 %v1840
    %1946 = vmatprep.subr.mxu0 0.0
    %1947 = vmatpush1.msra.mxu0 %v1841
    %1948 = vmatprep.subr.mxu0 0.0
    %1949 = vmatpush1.msra.mxu0 %v1842
    %1950 = vmatprep.subr.mxu0 0.0
    %1951 = vmatpush1.msra.mxu0 %v1843
    %1952 = vmatprep.subr.mxu0 0.0
    %1953 = vmatpush1.msra.mxu0 %v1844
    %1954 = vmatprep.subr.mxu0 0.0
    %1955 = vmatpush1.msra.mxu0 %v1845
    %1956 = vmatprep.subr.mxu0 0.0
    %1957 = vmatpush1.msra.mxu0 %v1846
    %1958 = vmatprep.subr.mxu0 0.0
    %1959 = vmatpush1.msra.mxu0 %v1847
    %1960 = vmatprep.subr.mxu0 0.0
    %1961 = vmatpush1.msra.mxu0 %v1848
    %1962 = vmatprep.subr.mxu0 0.0
    %1963 = vmatpush1.msra.mxu0 %v1849
    %1964 = vmatprep.subr.mxu0 0.0
    %1965 = vmatpush1.msra.mxu0 %v1850
    %1966 = vmatprep.mubr.f32.mxu0 %v1815
    %1967 = vmatmul.mubr.f32.gmra.mrb[0].mxu0 %v1814
    %v1968 = vpop.f32.mrb[0].mxu0
    %v1969 = vadd.f32 %v1896, %v1968
    %v1970 = vpop.f32.mrb[0].mxu0
    %1971 = vdwg.mxu0
    %1972 = vmatprep.subr.mxu0 0.0
    %1973 = vmatpush1.msra.mxu0 %v1851
    %1974 = vmatprep.subr.mxu0 0.0
    %1975 = vmatpush1.msra.mxu0 %v1852
    %1976 = vmatprep.subr.mxu0 0.0
    %1977 = vmatpush1.msra.mxu0 %v1853
    %1978 = vmatprep.subr.mxu0 0.0
    %1979 = vmatpush1.msra.mxu0 %v1854
    %1980 = vmatprep.subr.mxu0 0.0
    %1981 = vmatpush1.msra.mxu0 %v1855
    %1982 = vmatprep.subr.mxu0 0.0
    %1983 = vmatpush1.msra.mxu0 %v1856
    %1984 = vmatprep.subr.mxu0 0.0
    %1985 = vmatpush1.msra.mxu0 %v1857
    %1986 = vmatprep.subr.mxu0 0.0
    %1987 = vmatpush1.msra.mxu0 %v1858
    %1988 = vmatprep.subr.mxu0 0.0
    %1989 = vmatpush1.msra.mxu0 %v1859
    %1990 = vmatprep.subr.mxu0 0.0
    %1991 = vmatpush1.msra.mxu0 %v1860
    %1992 = vmatprep.subr.mxu0 0.0
    %1993 = vmatpush1.msra.mxu0 %v1861
    %1994 = vmatprep.subr.mxu0 0.0
    %1995 = vmatpush1.msra.mxu0 %v1862
    %1996 = vmatprep.subr.mxu0 0.0
    %1997 = vmatpush1.msra.mxu0 %v1863
    %1998 = vmatprep.subr.mxu0 0.0
    %1999 = vmatpush1.msra.mxu0 %v1864
    %2000 = vmatprep.subr.mxu0 0.0
    %2001 = vmatpush1.msra.mxu0 %v1865
    %2002 = vmatprep.subr.mxu0 0.0
    %2003 = vmatpush1.msra.mxu0 %v1866
    %2004 = vmatprep.subr.mxu0 0.0
    %2005 = vmatpush1.msra.mxu0 %v1867
    %2006 = vmatprep.subr.mxu0 0.0
    %2007 = vmatpush1.msra.mxu0 %v1868
    %2008 = vmatprep.subr.mxu0 0.0
    %2009 = vmatpush1.msra.mxu0 %v1869
    %2010 = vmatprep.subr.mxu0 0.0
    %2011 = vmatpush1.msra.mxu0 %v1870
    %2012 = vmatprep.subr.mxu0 0.0
    %2013 = vmatpush1.msra.mxu0 %v1871
    %2014 = vmatprep.subr.mxu0 0.0
    %2015 = vmatpush1.msra.mxu0 %v1872
    %2016 = vmatprep.subr.mxu0 0.0
    %2017 = vmatpush1.msra.mxu0 %v1873
    %2018 = vmatprep.subr.mxu0 0.0
    %2019 = vmatpush1.msra.mxu0 %v1874
    %2020 = vmatprep.subr.mxu0 0.0
    %2021 = vmatpush1.msra.mxu0 %v1875
    %2022 = vmatprep.subr.mxu0 0.0
    %2023 = vmatpush1.msra.mxu0 %v1876
    %2024 = vmatprep.subr.mxu0 0.0
    %2025 = vmatpush1.msra.mxu0 %v1877
    %2026 = vmatprep.subr.mxu0 0.0
    %2027 = vmatpush1.msra.mxu0 %v1878
    %2028 = vmatprep.subr.mxu0 0.0
    %2029 = vmatpush1.msra.mxu0 %v1879
    %2030 = vmatprep.subr.mxu0 0.0
    %2031 = vmatpush1.msra.mxu0 %v1880
    %2032 = vmatprep.subr.mxu0 0.0
    %2033 = vmatpush1.msra.mxu0 %v1881
    %2034 = vmatprep.subr.mxu0 0.0
    %2035 = vmatpush1.msra.mxu0 %v1882
    %2036 = vmatprep.mubr.f32.mxu0 %v1817
    %2037 = vmatmul.mubr.f32.gmra.mrb[0].mxu0 %v1816
    %v2038 = vpop.f32.mrb[0].mxu0
    %v2039 = vadd.f32 %v1969, %v2038
    %v2040 = vpop.f32.mrb[0].mxu0
    %2041 = vdwg.mxu0
    %2042 = vmatprep.subr.mxu0 0.0
    %2043 = vmatpush1.msra.mxu0 %v1883
    %2044 = vmatprep.subr.mxu0 0.0
    %2045 = vmatpush1.msra.mxu0 %v1884
    %2046 = vmatprep.subr.mxu0 0.0
    %2047 = vmatpush1.msra.mxu0 %v1885
    %2048 = vmatprep.subr.mxu0 0.0
    %2049 = vmatpush1.msra.mxu0 %v1886
    %2050 = vmatprep.subr.mxu0 0.0
    %2051 = vmatpush1.msra.mxu0 %v1887
    %2052 = vmatprep.subr.mxu0 0.0
    %2053 = vmatpush1.msra.mxu0 %v1888
    %2054 = vmatprep.subr.mxu0 0.0
    %2055 = vmatpush1.msra.mxu0 %v1889
    %2056 = vmatprep.subr.mxu0 0.0
    %2057 = vmatpush1.msra.mxu0 %v1890
    %2058 = vmatprep.subr.mxu0 0.0
    %2059 = vmatpush1.msra.mxu0 0.0
    %2060 = vmatprep.subr.mxu0 0.0
    %2061 = vmatpush1.msra.mxu0 0.0
    %2062 = vmatprep.subr.mxu0 0.0
    %2063 = vmatpush1.msra.mxu0 0.0
    %2064 = vmatprep.subr.mxu0 0.0
    %2065 = vmatpush1.msra.mxu0 0.0
    %2066 = vmatprep.subr.mxu0 0.0
    %2067 = vmatpush1.msra.mxu0 0.0
    %2068 = vmatprep.subr.mxu0 0.0
    %2069 = vmatpush1.msra.mxu0 0.0
    %2070 = vmatprep.subr.mxu0 0.0
    %2071 = vmatpush1.msra.mxu0 0.0
    %2072 = vmatprep.subr.mxu0 0.0
    %2073 = vmatpush1.msra.mxu0 0.0
    %2074 = vmatprep.subr.mxu0 0.0
    %2075 = vmatpush1.msra.mxu0 0.0
    %2076 = vmatprep.subr.mxu0 0.0
    %2077 = vmatpush1.msra.mxu0 0.0
    %2078 = vmatprep.subr.mxu0 0.0
    %2079 = vmatpush1.msra.mxu0 0.0
    %2080 = vmatprep.subr.mxu0 0.0
    %2081 = vmatpush1.msra.mxu0 0.0
    %2082 = vmatprep.subr.mxu0 0.0
    %2083 = vmatpush1.msra.mxu0 0.0
    %2084 = vmatprep.subr.mxu0 0.0
    %2085 = vmatpush1.msra.mxu0 0.0
    %2086 = vmatprep.subr.mxu0 0.0
    %2087 = vmatpush1.msra.mxu0 0.0
    %2088 = vmatprep.subr.mxu0 0.0
    %2089 = vmatpush1.msra.mxu0 0.0
    %2090 = vmatprep.subr.mxu0 0.0
    %2091 = vmatpush1.msra.mxu0 0.0
    %2092 = vmatprep.subr.mxu0 0.0
    %2093 = vmatpush1.msra.mxu0 0.0
    %2094 = vmatprep.subr.mxu0 0.0
    %2095 = vmatpush1.msra.mxu0 0.0
    %2096 = vmatprep.subr.mxu0 0.0
    %2097 = vmatpush1.msra.mxu0 0.0
    %2098 = vmatprep.subr.mxu0 0.0
    %2099 = vmatpush1.msra.mxu0 0.0
    %2100 = vmatprep.subr.mxu0 0.0
    %2101 = vmatpush1.msra.mxu0 0.0
    %2102 = vmatprep.subr.mxu0 0.0
    %2103 = vmatpush1.msra.mxu0 0.0
    %2104 = vmatprep.subr.mxu0 0.0
    %2105 = vmatpush1.msra.mxu0 0.0
    %2106 = vmatprep.mubr.f32.mxu0 0.0
    %2107 = vmatmul.mubr.f32.gmra.mrb[0].mxu0 %v1900
    %v2108 = vpop.f32.mrb[0].mxu0
    %v2109 = vadd.f32 %v2039, %v2108
    %v2110 = vpop.f32.mrb[0].mxu0
    %2111 = vdwg.mxu0
    %v2112 = vmax.f32 %v2109, 0.0
    %v2113 = vld [vmem:[#allocation20] sm:$0xff]
    %v2114 = vld [vmem:[#allocation20 + $0x8] sm:$0xff]
    %v2115 = vld [vmem:[#allocation20 + $0x10] sm:$0xff]
    %v2116 = vld [vmem:[#allocation20 + $0x18] sm:$0xff]
    %v2117 = vld [vmem:[#allocation20 + $0x20] sm:$0xff]
    %v2118 = vld [vmem:[#allocation20 + $0x28] sm:$0xff]
    %v2119 = vld [vmem:[#allocation20 + $0x30] sm:$0xff]
    %v2120 = vld [vmem:[#allocation20 + $0x38] sm:$0xff]
    %v2121 = vld [vmem:[#allocation20 + $0x40] sm:$0xff]
    %v2122 = vld [vmem:[#allocation20 + $0x48] sm:$0xff]
    %v2123 = vld [vmem:[#allocation20 + $0x50] sm:$0xff]
    %v2124 = vld [vmem:[#allocation20 + $0x58] sm:$0xff]
    %v2125 = vld [vmem:[#allocation20 + $0x60] sm:$0xff]
    %v2126 = vld [vmem:[#allocation20 + $0x68] sm:$0xff]
    %v2127 = vld [vmem:[#allocation20 + $0x70] sm:$0xff]
    %v2128 = vld [vmem:[#allocation20 + $0x78] sm:$0xff]
    %v2129 = vld [vmem:[%s16] sm:$0x1]
    %v2131 = vlaneseq
    %v2132 = vshrl.u32 %v2131, 7
    %v2133 = vsub.s32 0, %v2132
    %v2134 = vrot.slane %v2129, %v2133
    %2136 = vmatprep.subr.mxu0 0.0
    %2137 = vmatpush1.msra.mxu0 %v2113
    %2138 = vmatprep.subr.mxu0 0.0
    %2139 = vmatpush1.msra.mxu0 %v2114
    %2140 = vmatprep.subr.mxu0 0.0
    %2141 = vmatpush1.msra.mxu0 %v2115
    %2142 = vmatprep.subr.mxu0 0.0
    %2143 = vmatpush1.msra.mxu0 %v2116
    %2144 = vmatprep.subr.mxu0 0.0
    %2145 = vmatpush1.msra.mxu0 %v2117
    %2146 = vmatprep.subr.mxu0 0.0
    %2147 = vmatpush1.msra.mxu0 %v2118
    %2148 = vmatprep.subr.mxu0 0.0
    %2149 = vmatpush1.msra.mxu0 %v2119
    %2150 = vmatprep.subr.mxu0 0.0
    %2151 = vmatpush1.msra.mxu0 %v2120
    %2152 = vmatprep.subr.mxu0 0.0
    %2153 = vmatpush1.msra.mxu0 %v2121
    %2154 = vmatprep.subr.mxu0 0.0
    %2155 = vmatpush1.msra.mxu0 %v2122
    %2156 = vmatprep.subr.mxu0 0.0
    %2157 = vmatpush1.msra.mxu0 %v2123
    %2158 = vmatprep.subr.mxu0 0.0
    %2159 = vmatpush1.msra.mxu0 %v2124
    %2160 = vmatprep.subr.mxu0 0.0
    %2161 = vmatpush1.msra.mxu0 %v2125
    %2162 = vmatprep.subr.mxu0 0.0
    %2163 = vmatpush1.msra.mxu0 %v2126
    %2164 = vmatprep.subr.mxu0 0.0
    %2165 = vmatpush1.msra.mxu0 %v2127
    %2166 = vmatprep.subr.mxu0 0.0
    %2167 = vmatpush1.msra.mxu0 %v2128
    %2168 = vmatprep.subr.mxu0 0.0
    %2169 = vmatpush1.msra.mxu0 0.0
    %2170 = vmatprep.subr.mxu0 0.0
    %2171 = vmatpush1.msra.mxu0 0.0
    %2172 = vmatprep.subr.mxu0 0.0
    %2173 = vmatpush1.msra.mxu0 0.0
    %2174 = vmatprep.subr.mxu0 0.0
    %2175 = vmatpush1.msra.mxu0 0.0
    %2176 = vmatprep.subr.mxu0 0.0
    %2177 = vmatpush1.msra.mxu0 0.0
    %2178 = vmatprep.subr.mxu0 0.0
    %2179 = vmatpush1.msra.mxu0 0.0
    %2180 = vmatprep.subr.mxu0 0.0
    %2181 = vmatpush1.msra.mxu0 0.0
    %2182 = vmatprep.subr.mxu0 0.0
    %2183 = vmatpush1.msra.mxu0 0.0
    %2184 = vmatprep.subr.mxu0 0.0
    %2185 = vmatpush1.msra.mxu0 0.0
    %2186 = vmatprep.subr.mxu0 0.0
    %2187 = vmatpush1.msra.mxu0 0.0
    %2188 = vmatprep.subr.mxu0 0.0
    %2189 = vmatpush1.msra.mxu0 0.0
    %2190 = vmatprep.subr.mxu0 0.0
    %2191 = vmatpush1.msra.mxu0 0.0
    %2192 = vmatprep.subr.mxu0 0.0
    %2193 = vmatpush1.msra.mxu0 0.0
    %2194 = vmatprep.subr.mxu0 0.0
    %2195 = vmatpush1.msra.mxu0 0.0
    %2196 = vmatprep.subr.mxu0 0.0
    %2197 = vmatpush1.msra.mxu0 0.0
    %2198 = vmatprep.subr.mxu0 0.0
    %2199 = vmatpush1.msra.mxu0 0.0
    %2200 = vmatprep.mubr.f32.mxu0 0.0
    %2201 = vmatmul.mubr.f32.gmra.mrb[0].mxu0 %v2112
    %v2202 = vpop.f32.mrb[0].mxu0
    %v2203 = vadd.f32 %v2134, %v2202
    %v2204 = vpop.f32.mrb[0].mxu0
    %2205 = vdwg.mxu0
    %v2206 = vmax.f32 %v2203, 0.0
    %v2207 = vld [vmem:[#allocation22] sm:$0xff]
    %v2208 = vld [vmem:[#allocation22 + $0x8] sm:$0xff]
    %v2209 = vld [vmem:[#allocation22 + $0x10] sm:$0xff]
    %v2210 = vld [vmem:[#allocation22 + $0x18] sm:$0xff]
    %v2211 = vld [vmem:[#allocation22 + $0x20] sm:$0xff]
    %v2212 = vld [vmem:[#allocation22 + $0x28] sm:$0xff]
    %v2213 = vld [vmem:[#allocation22 + $0x30] sm:$0xff]
    %v2214 = vld [vmem:[#allocation22 + $0x38] sm:$0xff]
    %v2215 = vld [vmem:[#allocation22 + $0x40] sm:$0xff]
    %v2216 = vld [vmem:[#allocation22 + $0x48] sm:$0xff]
    %v2217 = vld [vmem:[#allocation22 + $0x50] sm:$0xff]
    %v2218 = vld [vmem:[#allocation22 + $0x58] sm:$0xff]
    %v2219 = vld [vmem:[#allocation22 + $0x60] sm:$0xff]
    %v2220 = vld [vmem:[#allocation22 + $0x68] sm:$0xff]
    %v2221 = vld [vmem:[#allocation22 + $0x70] sm:$0xff]
    %v2222 = vld [vmem:[#allocation22 + $0x78] sm:$0xff]
    %v2223 = vld [vmem:[%s18] sm:$0x1]
    %v2225 = vlaneseq
    %v2226 = vshrl.u32 %v2225, 7
    %v2227 = vsub.s32 0, %v2226
    %v2228 = vrot.slane %v2223, %v2227
    %2230 = vmatprep.subr.mxu0 0.0
    %2231 = vmatpush1.msra.mxu0 %v2207
    %2232 = vmatprep.subr.mxu0 0.0
    %2233 = vmatpush1.msra.mxu0 %v2208
    %2234 = vmatprep.subr.mxu0 0.0
    %2235 = vmatpush1.msra.mxu0 %v2209
    %2236 = vmatprep.subr.mxu0 0.0
    %2237 = vmatpush1.msra.mxu0 %v2210
    %2238 = vmatprep.subr.mxu0 0.0
    %2239 = vmatpush1.msra.mxu0 %v2211
    %2240 = vmatprep.subr.mxu0 0.0
    %2241 = vmatpush1.msra.mxu0 %v2212
    %2242 = vmatprep.subr.mxu0 0.0
    %2243 = vmatpush1.msra.mxu0 %v2213
    %2244 = vmatprep.subr.mxu0 0.0
    %2245 = vmatpush1.msra.mxu0 %v2214
    %2246 = vmatprep.subr.mxu0 0.0
    %2247 = vmatpush1.msra.mxu0 %v2215
    %2248 = vmatprep.subr.mxu0 0.0
    %2249 = vmatpush1.msra.mxu0 %v2216
    %2250 = vmatprep.subr.mxu0 0.0
    %2251 = vmatpush1.msra.mxu0 %v2217
    %2252 = vmatprep.subr.mxu0 0.0
    %2253 = vmatpush1.msra.mxu0 %v2218
    %2254 = vmatprep.subr.mxu0 0.0
    %2255 = vmatpush1.msra.mxu0 %v2219
    %2256 = vmatprep.subr.mxu0 0.0
    %2257 = vmatpush1.msra.mxu0 %v2220
    %2258 = vmatprep.subr.mxu0 0.0
    %2259 = vmatpush1.msra.mxu0 %v2221
    %2260 = vmatprep.subr.mxu0 0.0
    %2261 = vmatpush1.msra.mxu0 %v2222
    %2262 = vmatprep.subr.mxu0 0.0
    %2263 = vmatpush1.msra.mxu0 0.0
    %2264 = vmatprep.subr.mxu0 0.0
    %2265 = vmatpush1.msra.mxu0 0.0
    %2266 = vmatprep.subr.mxu0 0.0
    %2267 = vmatpush1.msra.mxu0 0.0
    %2268 = vmatprep.subr.mxu0 0.0
    %2269 = vmatpush1.msra.mxu0 0.0
    %2270 = vmatprep.subr.mxu0 0.0
    %2271 = vmatpush1.msra.mxu0 0.0
    %2272 = vmatprep.subr.mxu0 0.0
    %2273 = vmatpush1.msra.mxu0 0.0
    %2274 = vmatprep.subr.mxu0 0.0
    %2275 = vmatpush1.msra.mxu0 0.0
    %2276 = vmatprep.subr.mxu0 0.0
    %2277 = vmatpush1.msra.mxu0 0.0
    %2278 = vmatprep.subr.mxu0 0.0
    %2279 = vmatpush1.msra.mxu0 0.0
    %2280 = vmatprep.subr.mxu0 0.0
    %2281 = vmatpush1.msra.mxu0 0.0
    %2282 = vmatprep.subr.mxu0 0.0
    %2283 = vmatpush1.msra.mxu0 0.0
    %2284 = vmatprep.subr.mxu0 0.0
    %2285 = vmatpush1.msra.mxu0 0.0
    %2286 = vmatprep.subr.mxu0 0.0
    %2287 = vmatpush1.msra.mxu0 0.0
    %2288 = vmatprep.subr.mxu0 0.0
    %2289 = vmatpush1.msra.mxu0 0.0
    %2290 = vmatprep.subr.mxu0 0.0
    %2291 = vmatpush1.msra.mxu0 0.0
    %2292 = vmatprep.subr.mxu0 0.0
    %2293 = vmatpush1.msra.mxu0 0.0
    %2294 = vmatprep.mubr.f32.mxu0 0.0
    %2295 = vmatmul.mubr.f32.gmra.mrb[0].mxu0 %v2206
    %v2296 = vpop.f32.mrb[0].mxu0
    %v2297 = vadd.f32 %v2228, %v2296
    %v2298 = vpop.f32.mrb[0].mxu0
    %2299 = vdwg.mxu0
    %v2300 = vtanh.pop %v2297
    %v2301 = vld [vmem:[%s19] sm:$0x1]
    %v2303 = vlaneseq
    %v2304 = vshrl.u32 %v2303, 7
    %v2305 = vsub.s32 0, %v2304
    %v2306 = vrot.slane %v2301, %v2305
    %v2308 = vmul.f32 %v2306, %v2300
    %2309 = vst [vmem:[#allocation23] sm:$0xff] %v2308
    // Predicated region
    $region134: #{tpu_custom_call.1} parent=1 // pred_check
      _
    $region135: #{tpu_custom_call.1} parent=1 // pred_check_branch
      %2311 = sbr.rel (0) target = $region137
    $region136: #{tpu_custom_call.1} parent=1 // pred_region
      %s2313 = ssub.s32 128, 128
      %2314 = vsyncadd [#allocation4], %s2313
      %s2316 = sshll.u32 [#allocation23], 4
      %s2317 = int_to_ptr.vmem [resolvable:$true] %s2316
      %2319 = dma.vmem_to_hbm [thread:$0]  %s2317, 128, %s20, [#allocation4]
    $region137: #{tpu_custom_call.1} parent=1 // pred_fallthru
      _
    // Predicated region
    $region138: #{tpu_custom_call.1} parent=1 // pred_check
      _
    $region139: #{tpu_custom_call.1} parent=1 // pred_check_branch
      %2321 = sbr.rel (0) target = $region141
    $region140: #{tpu_custom_call.1} parent=1 // pred_region
      %2322 = dma.done [#allocation4], 128
    $region141: #{tpu_custom_call.1} parent=1 // pred_fallthru
      _
    %2323 = vsyncpa [#allocation3], 1
    %2324 = vsyncpa [#allocation6], 1
    %2325 = vsyncpa [#allocation9], 1
    %2326 = vsyncpa [#allocation12], 1
    %2327 = vsyncpa [#allocation15], 1
    %2328 = vsyncpa [#allocation18], 1
    %2329 = vsyncpa [#allocation21], 1
    %2330 = vsyncpa [#allocation4], 1

</llo_original>
